<compile_context>
chip_gen: v5e
topology: v5e:2x2
jax: 0.10.0
libtpu: 0.0.40
codegen_flags: <defaults>
</compile_context>

<pallas_src>
import functools
import math

import jax
import jax.numpy as jnp
from jax.experimental import pallas as pl
from jax.experimental.pallas import tpu as pltpu


def _perceiver_attn_kernel(h_ref, x_ref,
                           ln1g_ref, ln1b_ref, ln2g_ref, ln2b_ref,
                           *w_and_out,
                           n_heads, dk, dv, cqk, eps, fuse_qkv, mxu_dtype):
    if fuse_qkv:
        w_all_ref, b_all_ref, o_ref = w_and_out
    else:
        wq_ref, bq_ref, wkv_ref, bkv_ref, o_ref = w_and_out

    bb, L, Dq = h_ref.shape
    _, S, Dkv = x_ref.shape
    cv = n_heads * dv
    Rq = bb * L
    Rkv = bb * S

    # ---- LayerNorms on flattened (rows, channels) slabs, f32 VPU arithmetic. ----
    h2 = h_ref[...].reshape(Rq, Dq)
    mu1 = jnp.mean(h2, axis=-1, keepdims=True)
    var1 = jnp.mean((h2 - mu1) ** 2, axis=-1, keepdims=True)
    h_n = (h2 - mu1) * jax.lax.rsqrt(var1 + eps) * ln1g_ref[...] + ln1b_ref[...]

    x2 = x_ref[...].reshape(Rkv, Dkv)
    mu2 = jnp.mean(x2, axis=-1, keepdims=True)
    var2 = jnp.mean((x2 - mu2) ** 2, axis=-1, keepdims=True)
    x_n = (x2 - mu2) * jax.lax.rsqrt(var2 + eps) * ln2g_ref[...] + ln2b_ref[...]

    # ---- Projections (1/sqrt(dk) already folded into the Q weight/bias). ----
    if fuse_qkv:
        # One well-filled MXU push: [h_n; x_n] @ [Wq*s | Wk | Wv], bf16 operands,
        # f32 accumulation. The Q-rows x (K|V)-cols products are wasted FLOPs but
        # replace two badly underfilled pushes with a single wide one.
        hx = jnp.concatenate([h_n, x_n], axis=0).astype(mxu_dtype)
        proj = jnp.dot(hx, w_all_ref[...],
                       preferred_element_type=jnp.float32) + b_all_ref[...]
        q2 = proj[:Rq, :cqk].astype(mxu_dtype)
        k2 = proj[Rq:, cqk:2 * cqk].astype(mxu_dtype)
        v2 = proj[Rq:, 2 * cqk:].astype(mxu_dtype)
    else:
        q2 = (jnp.dot(h_n.astype(mxu_dtype), wq_ref[...],
                      preferred_element_type=jnp.float32)
              + bq_ref[...]).astype(mxu_dtype)
        kv2 = jnp.dot(x_n.astype(mxu_dtype), wkv_ref[...],
                      preferred_element_type=jnp.float32) + bkv_ref[...]
        k2 = kv2[:, :cqk].astype(mxu_dtype)
        v2 = kv2[:, cqk:].astype(mxu_dtype)

    # ---- Head split: one relayout per tensor for the whole block (no per-b loop). ----
    qh = jnp.swapaxes(q2.reshape(bb, L, n_heads, dk), 1, 2).reshape(bb * n_heads, L, dk)
    kh = jnp.swapaxes(k2.reshape(bb, S, n_heads, dk), 1, 2).reshape(bb * n_heads, S, dk)
    vh = jnp.swapaxes(v2.reshape(bb, S, n_heads, dv), 1, 2).reshape(bb * n_heads, S, dv)

    # ---- Attention: single batched contraction over (bb * n_heads). ----
    scores = jnp.einsum("bld,bsd->bls", qh, kh,
                        preferred_element_type=jnp.float32)           # (bb*H, L, S)
    m = jnp.max(scores, axis=-1, keepdims=True)
    p = jnp.exp(scores - m)
    denom = jnp.sum(p, axis=-1, keepdims=True)
    probs = p * pl.reciprocal(denom, approx=True)                      # EUP slot

    ctx = jnp.einsum("bls,bsd->bld", probs.astype(mxu_dtype), vh,
                     preferred_element_type=jnp.float32)               # (bb*H, L, dv)
    ctx = jnp.swapaxes(ctx.reshape(bb, n_heads, L, dv), 1, 2).reshape(bb, L, cv)
    o_ref[...] = ctx.astype(o_ref.dtype)


def prepare_attention_params(params, *, n_heads, mxu_dtype=jnp.bfloat16):
    """One-time (call-site hoisted) parameter preparation:
      * fold the 1/sqrt(dk) score scale into the Q projection weight and bias,
      * fuse [Wq*s | Wk | Wv] into one matmul when q_dim == kv_dim (else fuse
        only [Wk | Wv]),
      * pre-cast the fused weights to the MXU operand dtype (biases stay f32 and
        are added to the f32 accumulator)."""
    cqk = params["wq"].shape[1]
    cv = params["wv"].shape[1]
    dq = params["wq"].shape[0]
    dkv = params["wk"].shape[0]
    dk = cqk // n_heads
    scale = 1.0 / math.sqrt(dk)

    wq_s = params["wq"] * scale
    bq_s = params["bq"] * scale
    fuse_qkv = bool(dq == dkv)

    prep = {
        "n_heads": n_heads, "cqk": cqk, "cv": cv,
        "fuse_qkv": fuse_qkv, "mxu_dtype": mxu_dtype,
        "ln1_g": params["ln1_g"], "ln1_b": params["ln1_b"],
        "ln2_g": params["ln2_g"], "ln2_b": params["ln2_b"],
    }
    if fuse_qkv:
        prep["w_all"] = jnp.concatenate(
            [wq_s, params["wk"], params["wv"]], axis=1).astype(mxu_dtype)
        prep["b_all"] = jnp.concatenate([bq_s, params["bk"], params["bv"]], axis=1)
    else:
        prep["wq"] = wq_s.astype(mxu_dtype)
        prep["bq"] = bq_s
        prep["wkv"] = jnp.concatenate([params["wk"], params["wv"]], axis=1).astype(mxu_dtype)
        prep["bkv"] = jnp.concatenate([params["bk"], params["bv"]], axis=1)
    return prep


def perceiver_self_attention(hidden_states, inputs, prep, *, num_core_blocks=1):
    """hidden_states: (B, L, q_dim) f32; inputs: (B, S, kv_dim) f32.
    `prep` comes from prepare_attention_params(). On v7x pass num_core_blocks=2
    (and an even B) to shard the batch across the two TensorCores; on single-TC
    chips (v5e/v6e) leave it at 1 so the whole batch is one invocation."""
    B, L, Dq = hidden_states.shape
    _, S, Dkv = inputs.shape
    n_heads = prep["n_heads"]
    cqk, cv = prep["cqk"], prep["cv"]
    dk, dv = cqk // n_heads, cv // n_heads
    fuse_qkv = prep["fuse_qkv"]
    mxu_dtype = prep["mxu_dtype"]

    if num_core_blocks > 1 and B % num_core_blocks == 0:
        n_blocks = num_core_blocks
        semantics = (pltpu.CORE_PARALLEL,)   # actually land on both v7x TensorCores
    else:
        n_blocks = 1
        semantics = ("arbitrary",)
    bb = B // n_blocks

    if fuse_qkv:
        weight_args = (prep["w_all"], prep["b_all"])
        weight_specs = [
            pl.BlockSpec((Dq, 2 * cqk + cv), lambda i: (0, 0)),   # [Wq*s | Wk | Wv]
            pl.BlockSpec((1, 2 * cqk + cv), lambda i: (0, 0)),    # [bq*s | bk | bv]
        ]
    else:
        weight_args = (prep["wq"], prep["bq"], prep["wkv"], prep["bkv"])
        weight_specs = [
            pl.BlockSpec((Dq, cqk), lambda i: (0, 0)),            # Wq * s
            pl.BlockSpec((1, cqk), lambda i: (0, 0)),             # bq * s
            pl.BlockSpec((Dkv, cqk + cv), lambda i: (0, 0)),      # [Wk | Wv]
            pl.BlockSpec((1, cqk + cv), lambda i: (0, 0)),        # [bk | bv]
        ]
    # TODO(synk): at production channel sizes, mark these constant-index weight
    # blocks pipeline_mode=pl.Buffered(1) so they are not double-buffered
    # (material on v7x's 64 MiB VMEM); irrelevant at these toy sizes.

    w_bytes = 2 * (Dq * (2 * cqk + cv) if fuse_qkv else Dq * cqk + Dkv * (cqk + cv))
    cost = pl.CostEstimate(
        flops=2 * B * ((L + S) * max(Dq, Dkv) * (2 * cqk + cv)
                       + n_heads * L * S * (dk + dv)),
        transcendentals=B * n_heads * L * S,
        bytes_accessed=4 * (B * L * Dq + B * S * Dkv + B * L * cv
                            + 2 * Dq + 2 * Dkv + 2 * cqk + cv) + w_bytes,
    )

    kernel = functools.partial(
        _perceiver_attn_kernel, n_heads=n_heads, dk=dk, dv=dv, cqk=cqk,
        eps=1e-5, fuse_qkv=fuse_qkv, mxu_dtype=mxu_dtype)

    # TODO(synk): at production Perceiver sizes (S in the thousands, channels >= 256)
    # tile S on a trailing "arbitrary" grid axis with online-softmax (m, l, acc)
    # VMEM scratch and size the K/V tiles for double-buffering under v7x's
    # 32 MiB default scoped / 64 MiB physical VMEM; unnecessary at these shapes.
    out = pl.pallas_call(
        kernel,
        out_shape=jax.ShapeDtypeStruct((B, L, cv), jnp.float32),
        grid=(n_blocks,),
        in_specs=[
            pl.BlockSpec((bb, L, Dq), lambda i: (i, 0, 0)),    # hidden_states
            pl.BlockSpec((bb, S, Dkv), lambda i: (i, 0, 0)),   # inputs
            pl.BlockSpec((1, Dq), lambda i: (0, 0)),           # ln1 gamma
            pl.BlockSpec((1, Dq), lambda i: (0, 0)),           # ln1 beta
            pl.BlockSpec((1, Dkv), lambda i: (0, 0)),          # ln2 gamma
            pl.BlockSpec((1, Dkv), lambda i: (0, 0)),          # ln2 beta
            *weight_specs,
        ],
        out_specs=pl.BlockSpec((bb, L, cv), lambda i: (i, 0, 0)),
        compiler_params=pltpu.CompilerParams(dimension_semantics=semantics),
        cost_estimate=cost,
    )(hidden_states, inputs,
      prep["ln1_g"], prep["ln1_b"], prep["ln2_g"], prep["ln2_b"],
      *weight_args)
    return out


def _reference(hidden_states, inputs, params, *, n_heads):
    """Plain-JAX f32 reference mirroring the PyTorch PerceiverSelfAttention forward."""
    eps = 1e-5
    h = hidden_states
    mu = jnp.mean(h, -1, keepdims=True)
    var = jnp.mean((h - mu) ** 2, -1, keepdims=True)
    h_n = (h - mu) / jnp.sqrt(var + eps) * params["ln1_g"][0] + params["ln1_b"][0]
    x = inputs
    mu2 = jnp.mean(x, -1, keepdims=True)
    var2 = jnp.mean((x - mu2) ** 2, -1, keepdims=True)
    x_n = (x - mu2) / jnp.sqrt(var2 + eps) * params["ln2_g"][0] + params["ln2_b"][0]

    q = h_n @ params["wq"] + params["bq"][0]
    k = x_n @ params["wk"] + params["bk"][0]
    v = x_n @ params["wv"] + params["bv"][0]

    B, L, Cqk = q.shape
    S = k.shape[1]
    Cv = v.shape[-1]
    dk, dv = Cqk // n_heads, Cv // n_heads
    qh = q.reshape(B, L, n_heads, dk).transpose(0, 2, 1, 3)
    kh = k.reshape(B, S, n_heads, dk).transpose(0, 2, 1, 3)
    vh = v.reshape(B, S, n_heads, dv).transpose(0, 2, 1, 3)
    scores = jnp.einsum("bhld,bhsd->bhls", qh, kh) / math.sqrt(dk)
    probs = jax.nn.softmax(scores, axis=-1)
    ctx = jnp.einsum("bhls,bhsd->bhld", probs, vh)
    return ctx.transpose(0, 2, 1, 3).reshape(B, L, n_heads * dv)


def make_params(key, q_dim, kv_dim, qk_channels, v_channels):
    """Deterministic synthetic parameters (xavier-ish, mirrors reset_parameters)."""
    ks = jax.random.split(key, 6)

    def xavier(k, fan_in, fan_out):
        lim = math.sqrt(6.0 / (fan_in + fan_out))
        return jax.random.uniform(k, (fan_in, fan_out), jnp.float32, -lim, lim)

    return {
        "ln1_g": jnp.ones((1, q_dim), jnp.float32),
        "ln1_b": jnp.zeros((1, q_dim), jnp.float32),
        "ln2_g": jnp.ones((1, kv_dim), jnp.float32),
        "ln2_b": jnp.zeros((1, kv_dim), jnp.float32),
        # weights stored pre-transposed as (in, out) so kernels compute x @ W
        "wq": xavier(ks[0], q_dim, qk_channels),
        "bq": 0.02 * jax.random.normal(ks[5], (1, qk_channels), jnp.float32),
        "wk": xavier(ks[1], kv_dim, qk_channels),
        "bk": 0.02 * jax.random.normal(ks[2], (1, qk_channels), jnp.float32),
        "wv": xavier(ks[3], kv_dim, v_channels),
        "bv": 0.02 * jax.random.normal(ks[4], (1, v_channels), jnp.float32),
    }


if __name__ == "__main__":
    # Cross-attention config: n_heads=2, q_dim=kv_dim=32,
    # qk_channels=q_dim, v_channels=qk_channels (module defaults).
    B, L, S = 2, 8, 16
    q_dim = kv_dim = 32
    qk_channels = q_dim
    v_channels = qk_channels
    n_heads = 2

    key = jax.random.PRNGKey(0)
    k_h, k_x, k_p = jax.random.split(key, 3)
    hidden_states = jax.random.normal(k_h, (B, L, q_dim), jnp.float32)
    inputs = jax.random.normal(k_x, (B, S, kv_dim), jnp.float32)
    params = make_params(k_p, q_dim, kv_dim, qk_channels, v_channels)

    # One-time weight fusion / scale folding / bf16 cast (NOT per call).
    prep = prepare_attention_params(params, n_heads=n_heads)

    out = perceiver_self_attention(hidden_states, inputs, prep)
    out = jax.block_until_ready(out)

    ref = _reference(hidden_states, inputs, params, n_heads=n_heads)
    assert out.shape == (B, L, v_channels)
    # Loose inference tolerance: MXU operands (activations, weights, probs) are
    # bf16 and the softmax denominator uses the approximate EUP reciprocal.
    err = float(jnp.max(jnp.abs(out - ref)))
    assert jnp.allclose(out, ref, atol=5e-2, rtol=5e-2), err
    print("KERNEL_OK")
</pallas_src>

<mosaic_0001>
module attributes {stable_mosaic.version = 11 : i64} {
  func.func @_perceiver_attn_kernel(%arg0: i32, %arg1: memref<2x8x32xf32, #tpu.memory_space<vmem>>, %arg2: memref<2x16x32xf32, #tpu.memory_space<vmem>>, %arg3: memref<1x32xf32, #tpu.memory_space<vmem>>, %arg4: memref<1x32xf32, #tpu.memory_space<vmem>>, %arg5: memref<1x32xf32, #tpu.memory_space<vmem>>, %arg6: memref<1x32xf32, #tpu.memory_space<vmem>>, %arg7: memref<32x96xbf16, #tpu.memory_space<vmem>>, %arg8: memref<1x96xf32, #tpu.memory_space<vmem>>, %arg9: memref<2x8x32xf32, #tpu.memory_space<vmem>>) attributes {dimension_semantics = [#tpu.dimension_semantics<arbitrary>], iteration_bounds = array<i64: 1>, scalar_prefetch = 0 : i64, scratch_operands = 0 : i64, tpu.core_type = #tpu.core_type<tc>, window_params = [{transform_indices = @transform_0, window_bounds = array<i64: 2, 8, 32>}, {transform_indices = @transform_1, window_bounds = array<i64: 2, 16, 32>}, {pipeline_mode = #tpu.pipeline_mode<synchronous>, transform_indices = @transform_2, window_bounds = array<i64: 1, 32>}, {pipeline_mode = #tpu.pipeline_mode<synchronous>, transform_indices = @transform_3, window_bounds = array<i64: 1, 32>}, {pipeline_mode = #tpu.pipeline_mode<synchronous>, transform_indices = @transform_4, window_bounds = array<i64: 1, 32>}, {pipeline_mode = #tpu.pipeline_mode<synchronous>, transform_indices = @transform_5, window_bounds = array<i64: 1, 32>}, {pipeline_mode = #tpu.pipeline_mode<synchronous>, transform_indices = @transform_6, window_bounds = array<i64: 32, 96>}, {pipeline_mode = #tpu.pipeline_mode<synchronous>, transform_indices = @transform_7, window_bounds = array<i64: 1, 96>}, {transform_indices = @transform_8, window_bounds = array<i64: 2, 8, 32>}]} {
    %c0 = arith.constant 0 : index
    %c0_0 = arith.constant 0 : index
    %c0_1 = arith.constant 0 : index
    %0 = vector.load %arg1[%c0, %c0_0, %c0_1] : memref<2x8x32xf32, #tpu.memory_space<vmem>>, vector<2x8x32xf32>
    %1 = vector.shape_cast %0 : vector<2x8x32xf32> to vector<16x32xf32>
    %cst = arith.constant dense<0.000000e+00> : vector<16xf32>
    %2 = vector.multi_reduction <add>, %1, %cst [1] : vector<16x32xf32> to vector<16xf32>
    %3 = vector.shape_cast %2 : vector<16xf32> to vector<16x1xf32>
    %cst_2 = arith.constant 3.200000e+01 : f32
    %4 = vector.broadcast %cst_2 : f32 to vector<16x1xf32>
    %5 = arith.divf %3, %4 : vector<16x1xf32>
    %6 = vector.broadcast %5 : vector<16x1xf32> to vector<16x32xf32>
    %7 = arith.subf %1, %6 : vector<16x32xf32>
    %8 = arith.mulf %7, %7 : vector<16x32xf32>
    %cst_3 = arith.constant dense<0.000000e+00> : vector<16xf32>
    %9 = vector.multi_reduction <add>, %8, %cst_3 [1] : vector<16x32xf32> to vector<16xf32>
    %10 = vector.shape_cast %9 : vector<16xf32> to vector<16x1xf32>
    %cst_4 = arith.constant 3.200000e+01 : f32
    %11 = vector.broadcast %cst_4 : f32 to vector<16x1xf32>
    %12 = arith.divf %10, %11 : vector<16x1xf32>
    %13 = vector.broadcast %5 : vector<16x1xf32> to vector<16x32xf32>
    %14 = arith.subf %1, %13 : vector<16x32xf32>
    %cst_5 = arith.constant 9.99999974E-6 : f32
    %15 = vector.broadcast %cst_5 : f32 to vector<16x1xf32>
    %16 = arith.addf %12, %15 : vector<16x1xf32>
    %17 = math.rsqrt %16 : vector<16x1xf32>
    %18 = vector.broadcast %17 : vector<16x1xf32> to vector<16x32xf32>
    %19 = arith.mulf %14, %18 : vector<16x32xf32>
    %c0_6 = arith.constant 0 : index
    %c0_7 = arith.constant 0 : index
    %20 = vector.load %arg3[%c0_6, %c0_7] : memref<1x32xf32, #tpu.memory_space<vmem>>, vector<1x32xf32>
    %21 = vector.broadcast %20 : vector<1x32xf32> to vector<16x32xf32>
    %22 = arith.mulf %19, %21 : vector<16x32xf32>
    %c0_8 = arith.constant 0 : index
    %c0_9 = arith.constant 0 : index
    %23 = vector.load %arg4[%c0_8, %c0_9] : memref<1x32xf32, #tpu.memory_space<vmem>>, vector<1x32xf32>
    %24 = vector.broadcast %23 : vector<1x32xf32> to vector<16x32xf32>
    %25 = arith.addf %22, %24 : vector<16x32xf32>
    %c0_10 = arith.constant 0 : index
    %c0_11 = arith.constant 0 : index
    %c0_12 = arith.constant 0 : index
    %26 = vector.load %arg2[%c0_10, %c0_11, %c0_12] : memref<2x16x32xf32, #tpu.memory_space<vmem>>, vector<2x16x32xf32>
    %27 = vector.shape_cast %26 : vector<2x16x32xf32> to vector<32x32xf32>
    %cst_13 = arith.constant dense<0.000000e+00> : vector<32xf32>
    %28 = vector.multi_reduction <add>, %27, %cst_13 [1] : vector<32x32xf32> to vector<32xf32>
    %29 = vector.shape_cast %28 : vector<32xf32> to vector<32x1xf32>
    %cst_14 = arith.constant 3.200000e+01 : f32
    %30 = vector.broadcast %cst_14 : f32 to vector<32x1xf32>
    %31 = arith.divf %29, %30 : vector<32x1xf32>
    %32 = vector.broadcast %31 : vector<32x1xf32> to vector<32x32xf32>
    %33 = arith.subf %27, %32 : vector<32x32xf32>
    %34 = arith.mulf %33, %33 : vector<32x32xf32>
    %cst_15 = arith.constant dense<0.000000e+00> : vector<32xf32>
    %35 = vector.multi_reduction <add>, %34, %cst_15 [1] : vector<32x32xf32> to vector<32xf32>
    %36 = vector.shape_cast %35 : vector<32xf32> to vector<32x1xf32>
    %cst_16 = arith.constant 3.200000e+01 : f32
    %37 = vector.broadcast %cst_16 : f32 to vector<32x1xf32>
    %38 = arith.divf %36, %37 : vector<32x1xf32>
    %39 = vector.broadcast %31 : vector<32x1xf32> to vector<32x32xf32>
    %40 = arith.subf %27, %39 : vector<32x32xf32>
    %cst_17 = arith.constant 9.99999974E-6 : f32
    %41 = vector.broadcast %cst_17 : f32 to vector<32x1xf32>
    %42 = arith.addf %38, %41 : vector<32x1xf32>
    %43 = math.rsqrt %42 : vector<32x1xf32>
    %44 = vector.broadcast %43 : vector<32x1xf32> to vector<32x32xf32>
    %45 = arith.mulf %40, %44 : vector<32x32xf32>
    %c0_18 = arith.constant 0 : index
    %c0_19 = arith.constant 0 : index
    %46 = vector.load %arg5[%c0_18, %c0_19] : memref<1x32xf32, #tpu.memory_space<vmem>>, vector<1x32xf32>
    %47 = vector.broadcast %46 : vector<1x32xf32> to vector<32x32xf32>
    %48 = arith.mulf %45, %47 : vector<32x32xf32>
    %c0_20 = arith.constant 0 : index
    %c0_21 = arith.constant 0 : index
    %49 = vector.load %arg6[%c0_20, %c0_21] : memref<1x32xf32, #tpu.memory_space<vmem>>, vector<1x32xf32>
    %50 = vector.broadcast %49 : vector<1x32xf32> to vector<32x32xf32>
    %51 = arith.addf %48, %50 : vector<32x32xf32>
    %52 = tpu.concatenate %25, %51 in 0 : vector<16x32xf32>, vector<32x32xf32> -> vector<48x32xf32>
    %53 = arith.truncf %52 : vector<48x32xf32> to vector<48x32xbf16>
    %c0_22 = arith.constant 0 : index
    %c0_23 = arith.constant 0 : index
    %54 = vector.load %arg7[%c0_22, %c0_23] : memref<32x96xbf16, #tpu.memory_space<vmem>>, vector<32x96xbf16>
    %cst_24 = arith.constant dense<0.000000e+00> : vector<48x96xf32>
    %55 = tpu.matmul %53, %54, %cst_24 {dimension_numbers = #tpu.dot_dimension_numbers<[1], [0], [0], [1], [0, 0, 1, 1], [], []>} : vector<48x32xbf16>, vector<32x96xbf16>, vector<48x96xf32> -> vector<48x96xf32>
    %c0_25 = arith.constant 0 : index
    %c0_26 = arith.constant 0 : index
    %56 = vector.load %arg8[%c0_25, %c0_26] : memref<1x96xf32, #tpu.memory_space<vmem>>, vector<1x96xf32>
    %57 = vector.broadcast %56 : vector<1x96xf32> to vector<48x96xf32>
    %58 = arith.addf %55, %57 : vector<48x96xf32>
    %59 = vector.extract_strided_slice %58 {offsets = [0, 0], sizes = [16, 32], strides = [1, 1]} : vector<48x96xf32> to vector<16x32xf32>
    %60 = arith.truncf %59 : vector<16x32xf32> to vector<16x32xbf16>
    %61 = vector.extract_strided_slice %58 {offsets = [16, 32], sizes = [32, 32], strides = [1, 1]} : vector<48x96xf32> to vector<32x32xf32>
    %62 = arith.truncf %61 : vector<32x32xf32> to vector<32x32xbf16>
    %63 = vector.extract_strided_slice %58 {offsets = [16, 64], sizes = [32, 32], strides = [1, 1]} : vector<48x96xf32> to vector<32x32xf32>
    %64 = arith.truncf %63 : vector<32x32xf32> to vector<32x32xbf16>
    %65 = vector.shape_cast %60 : vector<16x32xbf16> to vector<2x8x2x16xbf16>
    %66 = tpu.transpose %65, [0, 2, 1, 3] : vector<2x8x2x16xbf16> -> vector<2x2x8x16xbf16>
    %67 = vector.shape_cast %66 : vector<2x2x8x16xbf16> to vector<4x8x16xbf16>
    %68 = vector.shape_cast %62 : vector<32x32xbf16> to vector<2x16x2x16xbf16>
    %69 = tpu.transpose %68, [0, 2, 1, 3] : vector<2x16x2x16xbf16> -> vector<2x2x16x16xbf16>
    %70 = vector.shape_cast %69 : vector<2x2x16x16xbf16> to vector<4x16x16xbf16>
    %71 = vector.shape_cast %64 : vector<32x32xbf16> to vector<2x16x2x16xbf16>
    %72 = tpu.transpose %71, [0, 2, 1, 3] : vector<2x16x2x16xbf16> -> vector<2x2x16x16xbf16>
    %73 = vector.shape_cast %72 : vector<2x2x16x16xbf16> to vector<4x16x16xbf16>
    "tpu.trace_start"() <{level = 10 : i32, message = "bld,bsd->bls"}> : () -> ()
    %cst_27 = arith.constant dense<0.000000e+00> : vector<4x8x16xf32>
    %74 = tpu.matmul %67, %70, %cst_27 {dimension_numbers = #tpu.dot_dimension_numbers<[2], [2], [1], [1], [0, 0, 0, 1, 1, 1], [0], [0]>} : vector<4x8x16xbf16>, vector<4x16x16xbf16>, vector<4x8x16xf32> -> vector<4x8x16xf32>
    "tpu.trace_stop"() : () -> ()
    %cst_28 = arith.constant dense<0xFF800000> : vector<4x8xf32>
    %75 = vector.multi_reduction <maximumf>, %74, %cst_28 [2] : vector<4x8x16xf32> to vector<4x8xf32>
    %76 = vector.shape_cast %75 : vector<4x8xf32> to vector<4x8x1xf32>
    %77 = vector.broadcast %76 : vector<4x8x1xf32> to vector<4x8x16xf32>
    %78 = arith.subf %74, %77 : vector<4x8x16xf32>
    %79 = math.exp %78 : vector<4x8x16xf32>
    %cst_29 = arith.constant dense<0.000000e+00> : vector<4x8xf32>
    %80 = vector.multi_reduction <add>, %79, %cst_29 [2] : vector<4x8x16xf32> to vector<4x8xf32>
    %81 = vector.shape_cast %80 : vector<4x8xf32> to vector<4x8x1xf32>
    %82 = tpu.reciprocal %81 {approx = true} : vector<4x8x1xf32> -> vector<4x8x1xf32>
    %83 = vector.broadcast %82 : vector<4x8x1xf32> to vector<4x8x16xf32>
    %84 = arith.mulf %79, %83 : vector<4x8x16xf32>
    %85 = arith.truncf %84 : vector<4x8x16xf32> to vector<4x8x16xbf16>
    "tpu.trace_start"() <{level = 10 : i32, message = "bls,bsd->bld"}> : () -> ()
    %cst_30 = arith.constant dense<0.000000e+00> : vector<4x8x16xf32>
    %86 = tpu.matmul %85, %73, %cst_30 {dimension_numbers = #tpu.dot_dimension_numbers<[2], [1], [1], [2], [0, 0, 0, 1, 1, 2], [0], [0]>} : vector<4x8x16xbf16>, vector<4x16x16xbf16>, vector<4x8x16xf32> -> vector<4x8x16xf32>
    "tpu.trace_stop"() : () -> ()
    %87 = vector.shape_cast %86 : vector<4x8x16xf32> to vector<2x2x8x16xf32>
    %88 = tpu.transpose %87, [0, 2, 1, 3] : vector<2x2x8x16xf32> -> vector<2x8x2x16xf32>
    %89 = vector.shape_cast %88 : vector<2x8x2x16xf32> to vector<2x8x32xf32>
    %c0_31 = arith.constant 0 : index
    %c0_32 = arith.constant 0 : index
    %c0_33 = arith.constant 0 : index
    %90 = vector.load %arg9[%c0_31, %c0_32, %c0_33] : memref<2x8x32xf32, #tpu.memory_space<vmem>>, vector<2x8x32xf32>
    tpu.vector_store %arg9[%c0_31, %c0_32, %c0_33], %89 {strides = array<i32>} : memref<2x8x32xf32, #tpu.memory_space<vmem>>, vector<2x8x32xf32>,
    return
  }
  func.func @transform_0(%arg0: i32) -> (i32, i32, i32) {
    %c0_i32 = arith.constant 0 : i32
    %c0_i32_0 = arith.constant 0 : i32
    %c0_i32_1 = arith.constant 0 : i32
    return %arg0, %c0_i32, %c0_i32_0 : i32, i32, i32
  }
  func.func @transform_1(%arg0: i32) -> (i32, i32, i32) {
    %c0_i32 = arith.constant 0 : i32
    %c0_i32_0 = arith.constant 0 : i32
    %c0_i32_1 = arith.constant 0 : i32
    return %arg0, %c0_i32, %c0_i32_0 : i32, i32, i32
  }
  func.func @transform_2(%arg0: i32) -> (i32, i32) {
    %c0_i32 = arith.constant 0 : i32
    %c0_i32_0 = arith.constant 0 : i32
    %c0_i32_1 = arith.constant 0 : i32
    return %c0_i32, %c0_i32_0 : i32, i32
  }
  func.func @transform_3(%arg0: i32) -> (i32, i32) {
    %c0_i32 = arith.constant 0 : i32
    %c0_i32_0 = arith.constant 0 : i32
    %c0_i32_1 = arith.constant 0 : i32
    return %c0_i32, %c0_i32_0 : i32, i32
  }
  func.func @transform_4(%arg0: i32) -> (i32, i32) {
    %c0_i32 = arith.constant 0 : i32
    %c0_i32_0 = arith.constant 0 : i32
    %c0_i32_1 = arith.constant 0 : i32
    return %c0_i32, %c0_i32_0 : i32, i32
  }
  func.func @transform_5(%arg0: i32) -> (i32, i32) {
    %c0_i32 = arith.constant 0 : i32
    %c0_i32_0 = arith.constant 0 : i32
    %c0_i32_1 = arith.constant 0 : i32
    return %c0_i32, %c0_i32_0 : i32, i32
  }
  func.func @transform_6(%arg0: i32) -> (i32, i32) {
    %c0_i32 = arith.constant 0 : i32
    %c0_i32_0 = arith.constant 0 : i32
    %c0_i32_1 = arith.constant 0 : i32
    return %c0_i32, %c0_i32_0 : i32, i32
  }
  func.func @transform_7(%arg0: i32) -> (i32, i32) {
    %c0_i32 = arith.constant 0 : i32
    %c0_i32_0 = arith.constant 0 : i32
    %c0_i32_1 = arith.constant 0 : i32
    return %c0_i32, %c0_i32_0 : i32, i32
  }
  func.func @transform_8(%arg0: i32) -> (i32, i32, i32) {
    %c0_i32 = arith.constant 0 : i32
    %c0_i32_0 = arith.constant 0 : i32
    %c0_i32_1 = arith.constant 0 : i32
    return %arg0, %c0_i32, %c0_i32_0 : i32, i32, i32
  }
}

</mosaic_0001>

<llo_original>
// kernel: tpu_custom_call.1
$region0: #{tpu_custom_call.1}
  #allocation0 [shape = 'u32[]', space=smem, size = 0x4, offset = 0x4, fixed_abs, tag = 'smem constant byte address 0x4 - core index']
  #allocation1 [shape = 'u32[72,128]{1,0:T(1,128)}', space=vmem, size = 0x9000, scoped, tag = 'internal scratch']
  %s0 = inlined_call_operand.hbm [shape: f32[2,8,32], index: 0, kind: input, shape index: {}]
  %s1 = inlined_call_operand.hbm [shape: f32[2,16,32], index: 1, kind: input, shape index: {}]
  %s2 = inlined_call_operand.vmem [shape: f32[1,32], index: 2, kind: input, shape index: {}]
  %s3 = inlined_call_operand.vmem [shape: f32[1,32], index: 3, kind: input, shape index: {}]
  %s4 = inlined_call_operand.vmem [shape: f32[1,32], index: 4, kind: input, shape index: {}]
  %s5 = inlined_call_operand.vmem [shape: f32[1,32], index: 5, kind: input, shape index: {}]
  %s6 = inlined_call_operand.hbm [shape: bf16[32,96], index: 6, kind: input, shape index: {}]
  %s7 = inlined_call_operand.vmem [shape: f32[1,96], index: 7, kind: input, shape index: {}]
  %s8 = inlined_call_operand.hbm [shape: f32[2,8,32], index: 8, kind: output, shape index: {}]
  %s9 = sld [smem:[#allocation0]]
  $region54: #{tpu_custom_call.1} parent=0
    _
  %s11 = ssub.s32 1, %s9
  %s12 = scalar_select 0, %s11, %s9
  $region1: #{tpu_custom_call.1} parent=0
    #allocation2 [shape = 'u8[8192]{0}', space=vmem, size = 0x2000, scoped, tag = 'input window, operand 0, single buffered']
    #allocation3 [shape = 's32[1]{0}', space=sflag, size = 0x4, scoped, tag = 'scoped memory for tpu_custom_call.1']
    #allocation4 [shape = 's32[1]{0}', space=sflag, size = 0x4, scoped, tag = 'scoped memory for tpu_custom_call.1']
    #allocation5 [shape = 'u8[16384]{0}', space=vmem, size = 0x4000, scoped, tag = 'input window, operand 1, single buffered']
    #allocation6 [shape = 's32[1]{0}', space=sflag, size = 0x4, scoped, tag = 'scoped memory for tpu_custom_call.1']
    #allocation7 [shape = 'u8[8192]{0}', space=vmem, size = 0x2000, scoped, tag = 'input window, operand 6, single buffered']
    #allocation8 [shape = 'u8[8192]{0}', space=vmem, size = 0x2000, scoped, tag = 'output window, operand 0, single buffered']
    %13 = vsyncpa [#allocation3], 0
    %14 = vsyncpa [#allocation6], 0
    %15 = vsyncpa [#allocation4], 0
    // Predicated region
    $region2: #{tpu_custom_call.1} parent=1 // pred_check
      _
    $region3: #{tpu_custom_call.1} parent=1 // pred_check_branch
      %17 = sbr.rel (0) target = $region5
    $region4: #{tpu_custom_call.1} parent=1 // pred_region
      %19 = vsyncadd [#allocation3], 0
      %s20 = sshll.u32 %s0, 4
      %s21 = int_to_ptr.hbm [resolvable:$true] %s20
      %s22 = sshll.u32 [#allocation2], 4
      %s23 = int_to_ptr.vmem [resolvable:$true] %s22
      %28 = dma.hbm_to_vmem [thread:$0]  %s21, 256, %s23, [#allocation3], 128, 128, 8
    $region5: #{tpu_custom_call.1} parent=1 // pred_fallthru
      _
    // Predicated region
    $region6: #{tpu_custom_call.1} parent=1 // pred_check
      _
    $region7: #{tpu_custom_call.1} parent=1 // pred_check_branch
      %30 = sbr.rel (0) target = $region9
    $region8: #{tpu_custom_call.1} parent=1 // pred_region
      %32 = vsyncadd [#allocation6], 0
      %s33 = sshll.u32 %s1, 4
      %s34 = int_to_ptr.hbm [resolvable:$true] %s33
      %s35 = sshll.u32 [#allocation5], 4
      %s36 = int_to_ptr.vmem [resolvable:$true] %s35
      %41 = dma.hbm_to_vmem [thread:$0]  %s34, 512, %s36, [#allocation6], 128, 128, 8
    $region9: #{tpu_custom_call.1} parent=1 // pred_fallthru
      _
    // Predicated region
    $region10: #{tpu_custom_call.1} parent=1 // pred_check
      _
    $region11: #{tpu_custom_call.1} parent=1 // pred_check_branch
      %43 = sbr.rel (0) target = $region13
    $region12: #{tpu_custom_call.1} parent=1 // pred_region
      _
    $region13: #{tpu_custom_call.1} parent=1 // pred_fallthru
      _
    // Predicated region
    $region14: #{tpu_custom_call.1} parent=1 // pred_check
      _
    $region15: #{tpu_custom_call.1} parent=1 // pred_check_branch
      %45 = sbr.rel (0) target = $region17
    $region16: #{tpu_custom_call.1} parent=1 // pred_region
      _
    $region17: #{tpu_custom_call.1} parent=1 // pred_fallthru
      _
    // Predicated region
    $region18: #{tpu_custom_call.1} parent=1 // pred_check
      _
    $region19: #{tpu_custom_call.1} parent=1 // pred_check_branch
      %47 = sbr.rel (0) target = $region21
    $region20: #{tpu_custom_call.1} parent=1 // pred_region
      _
    $region21: #{tpu_custom_call.1} parent=1 // pred_fallthru
      _
    // Predicated region
    $region22: #{tpu_custom_call.1} parent=1 // pred_check
      _
    $region23: #{tpu_custom_call.1} parent=1 // pred_check_branch
      %49 = sbr.rel (0) target = $region25
    $region24: #{tpu_custom_call.1} parent=1 // pred_region
      _
    $region25: #{tpu_custom_call.1} parent=1 // pred_fallthru
      _
    // Predicated region
    $region26: #{tpu_custom_call.1} parent=1 // pred_check
      _
    $region27: #{tpu_custom_call.1} parent=1 // pred_check_branch
      %51 = sbr.rel (0) target = $region29
    $region28: #{tpu_custom_call.1} parent=1 // pred_region
      %53 = vsyncadd [#allocation6], 0
      %s54 = sshll.u32 %s6, 4
      %s55 = int_to_ptr.hbm [resolvable:$true] %s54
      %s56 = sshll.u32 [#allocation7], 4
      %s57 = int_to_ptr.vmem [resolvable:$true] %s56
      %62 = dma.hbm_to_vmem [thread:$0]  %s55, 256, %s57, [#allocation6], 64, 64, 4
    $region29: #{tpu_custom_call.1} parent=1 // pred_fallthru
      _
    // Predicated region
    $region30: #{tpu_custom_call.1} parent=1 // pred_check
      _
    $region31: #{tpu_custom_call.1} parent=1 // pred_check_branch
      %64 = sbr.rel (0) target = $region33
    $region32: #{tpu_custom_call.1} parent=1 // pred_region
      _
    $region33: #{tpu_custom_call.1} parent=1 // pred_fallthru
      _
    // Predicated region
    $region34: #{tpu_custom_call.1} parent=1 // pred_check
      _
    $region35: #{tpu_custom_call.1} parent=1 // pred_check_branch
      %66 = sbr.rel (0) target = $region37
    $region36: #{tpu_custom_call.1} parent=1 // pred_region
      %68 = dma.done [#allocation3], 256
    $region37: #{tpu_custom_call.1} parent=1 // pred_fallthru
      _
    // Predicated region
    $region38: #{tpu_custom_call.1} parent=1 // pred_check
      _
    $region39: #{tpu_custom_call.1} parent=1 // pred_check_branch
      %70 = sbr.rel (0) target = $region41
    $region40: #{tpu_custom_call.1} parent=1 // pred_region
      %72 = dma.done [#allocation6], 512
    $region41: #{tpu_custom_call.1} parent=1 // pred_fallthru
      _
    // Predicated region
    $region42: #{tpu_custom_call.1} parent=1 // pred_check
      _
    $region43: #{tpu_custom_call.1} parent=1 // pred_check_branch
      %74 = sbr.rel (0) target = $region45
    $region44: #{tpu_custom_call.1} parent=1 // pred_region
      %76 = dma.done [#allocation6], 256
    $region45: #{tpu_custom_call.1} parent=1 // pred_fallthru
      _
    %v78 = vld [vmem:[#allocation2] sm:$0xff]
    %v79 = vld [vmem:[#allocation2 + $0x8] sm:$0xff]
    %vm80 = vcmask 261120
    %v81 = vsel %vm80, %v78, 0.0
    %82 = vadd.xlane.f32.xlu0 %v81
    %v83 = vpop.xlane.xlu0 %82
    %v84 = vsel %vm80, %v79, 0.0
    %85 = vadd.xlane.f32.xlu0 %v84
    %v86 = vpop.xlane.xlu0 %85
    %v87 = vrcp.pop 32.0
    %v88 = vmul.f32 32.0, %v87
    %v89 = vsub.f32 1.0, %v88
    %v90 = vmul.f32 %v87, %v89
    %v91 = vadd.f32 %v87, %v90
    %vm92 = vweird.f32 %v87
    %v93 = vsel %vm92, %v87, %v91
    %v94 = vmul.f32 %v83, %v93
    %v95 = vmul.f32 %v86, %v93
    %v96 = vsub.f32 %v78, %v94
    %v97 = vsub.f32 %v79, %v95
    %v98 = vmul.f32 %v96, %v96
    %v99 = vmul.f32 %v97, %v97
    %v100 = vsel %vm80, %v98, 0.0
    %101 = vadd.xlane.f32.xlu0 %v100
    %v102 = vpop.xlane.xlu0 %101
    %v103 = vsel %vm80, %v99, 0.0
    %104 = vadd.xlane.f32.xlu0 %v103
    %v105 = vpop.xlane.xlu0 %104
    %v106 = vmul.f32 %v102, %v93
    %v107 = vmul.f32 %v105, %v93
    %v108 = vadd.f32 %v106, 1e-05
    %v109 = vadd.f32 %v107, 1e-05
    %v110 = vrsqrt.pop %v108
    %v111 = vmul.f32 %v110, %v108
    %v112 = vmul.f32 %v111, %v110
    %v113 = vmul.f32 0.5, %v112
    %v114 = vsub.f32 1.5, %v113
    %v115 = vmul.f32 %v110, %v114
    %vm116 = vweird.f32 %v108
    %vm117 = vweird.f32 %v110
    %vm118 = vmor %vm116, %vm117
    %v119 = vsel %vm118, %v110, %v115
    %v120 = vrsqrt.pop %v109
    %v121 = vmul.f32 %v120, %v109
    %v122 = vmul.f32 %v121, %v120
    %v123 = vmul.f32 0.5, %v122
    %v124 = vsub.f32 1.5, %v123
    %v125 = vmul.f32 %v120, %v124
    %vm126 = vweird.f32 %v109
    %vm127 = vweird.f32 %v120
    %vm128 = vmor %vm126, %vm127
    %v129 = vsel %vm128, %v120, %v125
    %v130 = vmul.f32 %v96, %v119
    %v131 = vmul.f32 %v97, %v129
    %v132 = vld [vmem:[%s2] sm:$0x1]
    %v134 = vperm.slane %v132, 0
    %v136 = vmul.f32 %v130, %v134
    %v137 = vmul.f32 %v131, %v134
    %v138 = vld [vmem:[%s3] sm:$0x1]
    %v140 = vperm.slane %v138, 0
    %v142 = vadd.f32 %v136, %v140
    %v143 = vadd.f32 %v137, %v140
    %v144 = vld [vmem:[#allocation5] sm:$0xff]
    %v145 = vld [vmem:[#allocation5 + $0x8] sm:$0xff]
    %v146 = vld [vmem:[#allocation5 + $0x10] sm:$0xff]
    %v147 = vld [vmem:[#allocation5 + $0x18] sm:$0xff]
    %v148 = vsel %vm80, %v144, 0.0
    %149 = vadd.xlane.f32.xlu0 %v148
    %v150 = vpop.xlane.xlu0 %149
    %v151 = vsel %vm80, %v145, 0.0
    %152 = vadd.xlane.f32.xlu0 %v151
    %v153 = vpop.xlane.xlu0 %152
    %v154 = vsel %vm80, %v146, 0.0
    %155 = vadd.xlane.f32.xlu0 %v154
    %v156 = vpop.xlane.xlu0 %155
    %v157 = vsel %vm80, %v147, 0.0
    %158 = vadd.xlane.f32.xlu0 %v157
    %v159 = vpop.xlane.xlu0 %158
    %v160 = vmul.f32 %v150, %v93
    %v161 = vmul.f32 %v153, %v93
    %v162 = vmul.f32 %v156, %v93
    %v163 = vmul.f32 %v159, %v93
    %v164 = vsub.f32 %v144, %v160
    %v165 = vsub.f32 %v145, %v161
    %v166 = vsub.f32 %v146, %v162
    %v167 = vsub.f32 %v147, %v163
    %v168 = vmul.f32 %v164, %v164
    %v169 = vmul.f32 %v165, %v165
    %v170 = vmul.f32 %v166, %v166
    %v171 = vmul.f32 %v167, %v167
    %v172 = vsel %vm80, %v168, 0.0
    %173 = vadd.xlane.f32.xlu0 %v172
    %v174 = vpop.xlane.xlu0 %173
    %v175 = vsel %vm80, %v169, 0.0
    %176 = vadd.xlane.f32.xlu0 %v175
    %v177 = vpop.xlane.xlu0 %176
    %v178 = vsel %vm80, %v170, 0.0
    %179 = vadd.xlane.f32.xlu0 %v178
    %v180 = vpop.xlane.xlu0 %179
    %v181 = vsel %vm80, %v171, 0.0
    %182 = vadd.xlane.f32.xlu0 %v181
    %v183 = vpop.xlane.xlu0 %182
    %v184 = vmul.f32 %v174, %v93
    %v185 = vmul.f32 %v177, %v93
    %v186 = vmul.f32 %v180, %v93
    %v187 = vmul.f32 %v183, %v93
    %v188 = vadd.f32 %v184, 1e-05
    %v189 = vadd.f32 %v185, 1e-05
    %v190 = vadd.f32 %v186, 1e-05
    %v191 = vadd.f32 %v187, 1e-05
    %v192 = vrsqrt.pop %v188
    %v193 = vmul.f32 %v192, %v188
    %v194 = vmul.f32 %v193, %v192
    %v195 = vmul.f32 0.5, %v194
    %v196 = vsub.f32 1.5, %v195
    %v197 = vmul.f32 %v192, %v196
    %vm198 = vweird.f32 %v188
    %vm199 = vweird.f32 %v192
    %vm200 = vmor %vm198, %vm199
    %v201 = vsel %vm200, %v192, %v197
    %v202 = vrsqrt.pop %v189
    %v203 = vmul.f32 %v202, %v189
    %v204 = vmul.f32 %v203, %v202
    %v205 = vmul.f32 0.5, %v204
    %v206 = vsub.f32 1.5, %v205
    %v207 = vmul.f32 %v202, %v206
    %vm208 = vweird.f32 %v189
    %vm209 = vweird.f32 %v202
    %vm210 = vmor %vm208, %vm209
    %v211 = vsel %vm210, %v202, %v207
    %v212 = vrsqrt.pop %v190
    %v213 = vmul.f32 %v212, %v190
    %v214 = vmul.f32 %v213, %v212
    %v215 = vmul.f32 0.5, %v214
    %v216 = vsub.f32 1.5, %v215
    %v217 = vmul.f32 %v212, %v216
    %vm218 = vweird.f32 %v190
    %vm219 = vweird.f32 %v212
    %vm220 = vmor %vm218, %vm219
    %v221 = vsel %vm220, %v212, %v217
    %v222 = vrsqrt.pop %v191
    %v223 = vmul.f32 %v222, %v191
    %v224 = vmul.f32 %v223, %v222
    %v225 = vmul.f32 0.5, %v224
    %v226 = vsub.f32 1.5, %v225
    %v227 = vmul.f32 %v222, %v226
    %vm228 = vweird.f32 %v191
    %vm229 = vweird.f32 %v222
    %vm230 = vmor %vm228, %vm229
    %v231 = vsel %vm230, %v222, %v227
    %v232 = vmul.f32 %v164, %v201
    %v233 = vmul.f32 %v165, %v211
    %v234 = vmul.f32 %v166, %v221
    %v235 = vmul.f32 %v167, %v231
    %v236 = vld [vmem:[%s4] sm:$0x1]
    %v238 = vperm.slane %v236, 0
    %v240 = vmul.f32 %v232, %v238
    %v241 = vmul.f32 %v233, %v238
    %v242 = vmul.f32 %v234, %v238
    %v243 = vmul.f32 %v235, %v238
    %v244 = vld [vmem:[%s5] sm:$0x1]
    %v246 = vperm.slane %v244, 0
    %v248 = vadd.f32 %v240, %v246
    %v249 = vadd.f32 %v241, %v246
    %v250 = vadd.f32 %v242, %v246
    %v251 = vadd.f32 %v243, %v246
    %v252 = vpack.c.bf16 %v143, %v142
    %v253 = vpack.c.bf16 %v249, %v248
    %v254 = vpack.c.bf16 %v251, %v250
    %v255 = vld [vmem:[#allocation7] sm:$0xf]
    %v256 = vld [vmem:[#allocation7 + $0x4] sm:$0xf]
    %v257 = vld [vmem:[#allocation7 + $0x8] sm:$0xf]
    %v258 = vld [vmem:[#allocation7 + $0xc] sm:$0xf]
    %v259 = vld [vmem:[%s7] sm:$0x1]
    %v261 = vperm.slane %v259, 0
    %v267 = vunpack.c.l.b16 %v255
    %v268 = vunpack.c.l.b16 %v256
    %v269 = vunpack.c.l.b16 %v257
    %v270 = vunpack.c.l.b16 %v258
    %v271 = vpack.c.b16 %v268, %v267
    %v272 = vpack.c.b16 %v270, %v269
    %v276 = vsel %vm80, %v252, 0
    %v279 = vsel %vm80, %v253, 0
    %v282 = vsel %vm80, %v254, 0
    %284 = vmatpush.bf16.msra.mxu0 0
    %285 = vmatpush.bf16.msra.mxu0 0
    %286 = vmatpush.bf16.msra.mxu0 0
    %287 = vmatpush.bf16.msra.mxu0 0
    %288 = vmatpush.bf16.msra.mxu0 0
    %289 = vmatpush.bf16.msra.mxu0 0
    %290 = vmatpush.bf16.msra.mxu0 %v272
    %291 = vmatpush.bf16.msra.mxu0 %v271
    %292 = vmatmul.bf16.gmra.mxu0 %v276
    %v293 = vpop.f32.mrf.mxu0
    %v294 = vadd.f32 %v261, %v293
    %v295 = vpop.f32.mrf.mxu0
    %v296 = vadd.f32 %v261, %v295
    %297 = vmatmul.bf16.gmra.mxu0 %v279
    %v298 = vpop.f32.mrf.mxu0
    %v299 = vadd.f32 %v261, %v298
    %v300 = vpop.f32.mrf.mxu0
    %v301 = vadd.f32 %v261, %v300
    %302 = vmatmul.bf16.gmra.mxu0 %v282
    %v303 = vpop.f32.mrf.mxu0
    %v304 = vadd.f32 %v261, %v303
    %v305 = vpop.f32.mrf.mxu0
    %v306 = vadd.f32 %v261, %v305
    %307 = vdwg.mxu0
    %v308 = vpack.c.bf16 %v294, %v294
    %v309 = vpack.c.bf16 %v296, %v296
    %v310 = vpack.c.bf16 %v299, %v299
    %v311 = vpack.c.bf16 %v301, %v301
    %v312 = vpack.c.bf16 %v304, %v304
    %v313 = vpack.c.bf16 %v306, %v306
    %316 = vrot.lane.b32.xlu0 %v308, 112
    %v317 = vpop.permute.xlu0 %316
    %318 = vrot.lane.b32.xlu0 %v309, 112
    %v319 = vpop.permute.xlu0 %318
    %v322 = vpack.i.b16 %v317, %v308
    %v323 = vshrl.u32 %v308, 16
    %v324 = vshrl.u32 %v317, 16
    %v325 = vpack.i.b16 %v324, %v323
    %v328 = vpack.i.b16 %v319, %v309
    %v329 = vshrl.u32 %v309, 16
    %v330 = vshrl.u32 %v319, 16
    %v331 = vpack.i.b16 %v330, %v329
    %v334 = vunpack.c.l.s4 1983009808
    %v335 = vunpack.c.0.s8 %v334
    %v336 = vperm.slane %v322, %v335
    %v337 = vrot.slane %v336, 4
    %vm338 = vcmask 1047556
    %v339 = vsel %vm338, 0, %v337
    %v341 = vunpack.c.l.s4 1934713408
    %v342 = vunpack.c.0.s8 %v341
    %v343 = vperm.slane %v336, %v342
    %v345 = vunpack.c.l.s4 1934713408
    %v346 = vunpack.c.0.s8 %v345
    %v347 = vperm.slane %v339, %v346
    %v348 = vrot.slane %v343, 4
    %v349 = vsel %vm338, 0, %v348
    %v350 = vrot.slane %v347, 4
    %v351 = vsel %vm338, 0, %v350
    %v354 = vunpack.c.l.s4 1983009808
    %v355 = vunpack.c.0.s8 %v354
    %v356 = vperm.slane %v325, %v355
    %v357 = vrot.slane %v356, 4
    %v358 = vsel %vm338, 0, %v357
    %v360 = vunpack.c.l.s4 1934713408
    %v361 = vunpack.c.0.s8 %v360
    %v362 = vperm.slane %v356, %v361
    %v364 = vunpack.c.l.s4 1934713408
    %v365 = vunpack.c.0.s8 %v364
    %v366 = vperm.slane %v358, %v365
    %v367 = vrot.slane %v362, 4
    %v368 = vsel %vm338, 0, %v367
    %v369 = vrot.slane %v366, 4
    %v370 = vsel %vm338, 0, %v369
    %v373 = vunpack.c.l.s4 1983009808
    %v374 = vunpack.c.0.s8 %v373
    %v375 = vperm.slane %v328, %v374
    %v376 = vrot.slane %v375, 4
    %v377 = vsel %vm338, 0, %v376
    %v379 = vunpack.c.l.s4 1934713408
    %v380 = vunpack.c.0.s8 %v379
    %v381 = vperm.slane %v375, %v380
    %v383 = vunpack.c.l.s4 1934713408
    %v384 = vunpack.c.0.s8 %v383
    %v385 = vperm.slane %v377, %v384
    %v386 = vrot.slane %v381, 4
    %v387 = vsel %vm338, 0, %v386
    %v388 = vrot.slane %v385, 4
    %v389 = vsel %vm338, 0, %v388
    %v392 = vunpack.c.l.s4 1983009808
    %v393 = vunpack.c.0.s8 %v392
    %v394 = vperm.slane %v331, %v393
    %v395 = vrot.slane %v394, 4
    %v396 = vsel %vm338, 0, %v395
    %v398 = vunpack.c.l.s4 1934713408
    %v399 = vunpack.c.0.s8 %v398
    %v400 = vperm.slane %v394, %v399
    %v402 = vunpack.c.l.s4 1934713408
    %v403 = vunpack.c.0.s8 %v402
    %v404 = vperm.slane %v396, %v403
    %v405 = vrot.slane %v400, 4
    %v406 = vsel %vm338, 0, %v405
    %v407 = vrot.slane %v404, 4
    %v408 = vsel %vm338, 0, %v407
    %v409 = vsel %vm338, %v350, %v343
    %v411 = vunpack.c.l.s4 1983009808
    %v412 = vunpack.c.0.s8 %v411
    %v413 = vperm.slane %v409, %v412
    %v414 = vrot.slane %v351, 4
    %v415 = vsel %vm338, %v414, %v349
    %v417 = vunpack.c.l.s4 1983009808
    %v418 = vunpack.c.0.s8 %v417
    %v419 = vperm.slane %v415, %v418
    %v420 = vrot.slane %v419, 4
    %v421 = vsel %vm338, %v420, %v413
    %v423 = vunpack.c.l.s4 1934713408
    %v424 = vunpack.c.0.s8 %v423
    %v425 = vperm.slane %v421, %v424
    %v426 = vsel %vm338, %v369, %v362
    %v428 = vunpack.c.l.s4 1983009808
    %v429 = vunpack.c.0.s8 %v428
    %v430 = vperm.slane %v426, %v429
    %v431 = vrot.slane %v370, 4
    %v432 = vsel %vm338, %v431, %v368
    %v434 = vunpack.c.l.s4 1983009808
    %v435 = vunpack.c.0.s8 %v434
    %v436 = vperm.slane %v432, %v435
    %v437 = vrot.slane %v436, 4
    %v438 = vsel %vm338, %v437, %v430
    %v440 = vunpack.c.l.s4 1934713408
    %v441 = vunpack.c.0.s8 %v440
    %v442 = vperm.slane %v438, %v441
    %v443 = vsel %vm338, %v388, %v381
    %v445 = vunpack.c.l.s4 1983009808
    %v446 = vunpack.c.0.s8 %v445
    %v447 = vperm.slane %v443, %v446
    %v448 = vrot.slane %v389, 4
    %v449 = vsel %vm338, %v448, %v387
    %v451 = vunpack.c.l.s4 1983009808
    %v452 = vunpack.c.0.s8 %v451
    %v453 = vperm.slane %v449, %v452
    %v454 = vrot.slane %v453, 4
    %v455 = vsel %vm338, %v454, %v447
    %v457 = vunpack.c.l.s4 1934713408
    %v458 = vunpack.c.0.s8 %v457
    %v459 = vperm.slane %v455, %v458
    %v460 = vsel %vm338, %v407, %v400
    %v462 = vunpack.c.l.s4 1983009808
    %v463 = vunpack.c.0.s8 %v462
    %v464 = vperm.slane %v460, %v463
    %v465 = vrot.slane %v408, 4
    %v466 = vsel %vm338, %v465, %v406
    %v468 = vunpack.c.l.s4 1983009808
    %v469 = vunpack.c.0.s8 %v468
    %v470 = vperm.slane %v466, %v469
    %v471 = vrot.slane %v470, 4
    %v472 = vsel %vm338, %v471, %v464
    %v474 = vunpack.c.l.s4 1934713408
    %v475 = vunpack.c.0.s8 %v474
    %v476 = vperm.slane %v472, %v475
    %v479 = vpack.i.b16 %v442, %v425
    %v480 = vshrl.u32 %v425, 16
    %v481 = vshrl.u32 %v442, 16
    %v482 = vpack.i.b16 %v481, %v480
    %v485 = vpack.i.b16 %v476, %v459
    %v486 = vshrl.u32 %v459, 16
    %v487 = vshrl.u32 %v476, 16
    %v488 = vpack.i.b16 %v487, %v486
    %493 = vrot.lane.b32.xlu0 %v310, 112
    %v494 = vpop.permute.xlu0 %493
    %495 = vrot.lane.b32.xlu0 %v311, 112
    %v496 = vpop.permute.xlu0 %495
    %497 = vrot.lane.b32.xlu0 %v312, 112
    %v498 = vpop.permute.xlu0 %497
    %499 = vrot.lane.b32.xlu0 %v313, 112
    %v500 = vpop.permute.xlu0 %499
    %501 = vrot.lane.b32.xlu0 %v310, 96
    %v502 = vpop.permute.xlu0 %501
    %503 = vrot.lane.b32.xlu0 %v311, 96
    %v504 = vpop.permute.xlu0 %503
    %505 = vrot.lane.b32.xlu0 %v312, 96
    %v506 = vpop.permute.xlu0 %505
    %507 = vrot.lane.b32.xlu0 %v313, 96
    %v508 = vpop.permute.xlu0 %507
    %509 = vrot.lane.b32.xlu0 %v494, 96
    %v510 = vpop.permute.xlu0 %509
    %511 = vrot.lane.b32.xlu0 %v496, 96
    %v512 = vpop.permute.xlu0 %511
    %513 = vrot.lane.b32.xlu0 %v498, 96
    %v514 = vpop.permute.xlu0 %513
    %515 = vrot.lane.b32.xlu0 %v500, 96
    %v516 = vpop.permute.xlu0 %515
    %v519 = vpack.i.b16 %v510, %v502
    %v520 = vshrl.u32 %v502, 16
    %v521 = vshrl.u32 %v510, 16
    %v522 = vpack.i.b16 %v521, %v520
    %v525 = vpack.i.b16 %v512, %v504
    %v526 = vshrl.u32 %v504, 16
    %v527 = vshrl.u32 %v512, 16
    %v528 = vpack.i.b16 %v527, %v526
    %v531 = vpack.i.b16 %v514, %v506
    %v532 = vshrl.u32 %v506, 16
    %v533 = vshrl.u32 %v514, 16
    %v534 = vpack.i.b16 %v533, %v532
    %v537 = vpack.i.b16 %v516, %v508
    %v538 = vshrl.u32 %v508, 16
    %v539 = vshrl.u32 %v516, 16
    %v540 = vpack.i.b16 %v539, %v538
    %v543 = vunpack.c.l.s4 1983009808
    %v544 = vunpack.c.0.s8 %v543
    %v545 = vperm.slane %v519, %v544
    %v546 = vrot.slane %v545, 4
    %v547 = vsel %vm338, 0, %v546
    %v549 = vunpack.c.l.s4 1934713408
    %v550 = vunpack.c.0.s8 %v549
    %v551 = vperm.slane %v545, %v550
    %v553 = vunpack.c.l.s4 1934713408
    %v554 = vunpack.c.0.s8 %v553
    %v555 = vperm.slane %v547, %v554
    %v556 = vrot.slane %v551, 4
    %v557 = vsel %vm338, 0, %v556
    %v558 = vrot.slane %v555, 4
    %v559 = vsel %vm338, 0, %v558
    %v562 = vunpack.c.l.s4 1983009808
    %v563 = vunpack.c.0.s8 %v562
    %v564 = vperm.slane %v522, %v563
    %v565 = vrot.slane %v564, 4
    %v566 = vsel %vm338, 0, %v565
    %v568 = vunpack.c.l.s4 1934713408
    %v569 = vunpack.c.0.s8 %v568
    %v570 = vperm.slane %v564, %v569
    %v572 = vunpack.c.l.s4 1934713408
    %v573 = vunpack.c.0.s8 %v572
    %v574 = vperm.slane %v566, %v573
    %v575 = vrot.slane %v570, 4
    %v576 = vsel %vm338, 0, %v575
    %v577 = vrot.slane %v574, 4
    %v578 = vsel %vm338, 0, %v577
    %v581 = vunpack.c.l.s4 1983009808
    %v582 = vunpack.c.0.s8 %v581
    %v583 = vperm.slane %v525, %v582
    %v584 = vrot.slane %v583, 4
    %v585 = vsel %vm338, 0, %v584
    %v587 = vunpack.c.l.s4 1934713408
    %v588 = vunpack.c.0.s8 %v587
    %v589 = vperm.slane %v583, %v588
    %v591 = vunpack.c.l.s4 1934713408
    %v592 = vunpack.c.0.s8 %v591
    %v593 = vperm.slane %v585, %v592
    %v594 = vrot.slane %v589, 4
    %v595 = vsel %vm338, 0, %v594
    %v596 = vrot.slane %v593, 4
    %v597 = vsel %vm338, 0, %v596
    %v600 = vunpack.c.l.s4 1983009808
    %v601 = vunpack.c.0.s8 %v600
    %v602 = vperm.slane %v528, %v601
    %v603 = vrot.slane %v602, 4
    %v604 = vsel %vm338, 0, %v603
    %v606 = vunpack.c.l.s4 1934713408
    %v607 = vunpack.c.0.s8 %v606
    %v608 = vperm.slane %v602, %v607
    %v610 = vunpack.c.l.s4 1934713408
    %v611 = vunpack.c.0.s8 %v610
    %v612 = vperm.slane %v604, %v611
    %v613 = vrot.slane %v608, 4
    %v614 = vsel %vm338, 0, %v613
    %v615 = vrot.slane %v612, 4
    %v616 = vsel %vm338, 0, %v615
    %v619 = vunpack.c.l.s4 1983009808
    %v620 = vunpack.c.0.s8 %v619
    %v621 = vperm.slane %v531, %v620
    %v622 = vrot.slane %v621, 4
    %v623 = vsel %vm338, 0, %v622
    %v625 = vunpack.c.l.s4 1934713408
    %v626 = vunpack.c.0.s8 %v625
    %v627 = vperm.slane %v621, %v626
    %v629 = vunpack.c.l.s4 1934713408
    %v630 = vunpack.c.0.s8 %v629
    %v631 = vperm.slane %v623, %v630
    %v632 = vrot.slane %v627, 4
    %v633 = vsel %vm338, 0, %v632
    %v634 = vrot.slane %v631, 4
    %v635 = vsel %vm338, 0, %v634
    %v638 = vunpack.c.l.s4 1983009808
    %v639 = vunpack.c.0.s8 %v638
    %v640 = vperm.slane %v534, %v639
    %v641 = vrot.slane %v640, 4
    %v642 = vsel %vm338, 0, %v641
    %v644 = vunpack.c.l.s4 1934713408
    %v645 = vunpack.c.0.s8 %v644
    %v646 = vperm.slane %v640, %v645
    %v648 = vunpack.c.l.s4 1934713408
    %v649 = vunpack.c.0.s8 %v648
    %v650 = vperm.slane %v642, %v649
    %v651 = vrot.slane %v646, 4
    %v652 = vsel %vm338, 0, %v651
    %v653 = vrot.slane %v650, 4
    %v654 = vsel %vm338, 0, %v653
    %v657 = vunpack.c.l.s4 1983009808
    %v658 = vunpack.c.0.s8 %v657
    %v659 = vperm.slane %v537, %v658
    %v660 = vrot.slane %v659, 4
    %v661 = vsel %vm338, 0, %v660
    %v663 = vunpack.c.l.s4 1934713408
    %v664 = vunpack.c.0.s8 %v663
    %v665 = vperm.slane %v659, %v664
    %v667 = vunpack.c.l.s4 1934713408
    %v668 = vunpack.c.0.s8 %v667
    %v669 = vperm.slane %v661, %v668
    %v670 = vrot.slane %v665, 4
    %v671 = vsel %vm338, 0, %v670
    %v672 = vrot.slane %v669, 4
    %v673 = vsel %vm338, 0, %v672
    %v676 = vunpack.c.l.s4 1983009808
    %v677 = vunpack.c.0.s8 %v676
    %v678 = vperm.slane %v540, %v677
    %v679 = vrot.slane %v678, 4
    %v680 = vsel %vm338, 0, %v679
    %v682 = vunpack.c.l.s4 1934713408
    %v683 = vunpack.c.0.s8 %v682
    %v684 = vperm.slane %v678, %v683
    %v686 = vunpack.c.l.s4 1934713408
    %v687 = vunpack.c.0.s8 %v686
    %v688 = vperm.slane %v680, %v687
    %v689 = vrot.slane %v684, 4
    %v690 = vsel %vm338, 0, %v689
    %v691 = vrot.slane %v688, 4
    %v692 = vsel %vm338, 0, %v691
    %v693 = vsel %vm338, %v558, %v551
    %v695 = vunpack.c.l.s4 1983009808
    %v696 = vunpack.c.0.s8 %v695
    %v697 = vperm.slane %v693, %v696
    %v698 = vrot.slane %v559, 4
    %v699 = vsel %vm338, %v698, %v557
    %v701 = vunpack.c.l.s4 1983009808
    %v702 = vunpack.c.0.s8 %v701
    %v703 = vperm.slane %v699, %v702
    %v704 = vrot.slane %v703, 4
    %v705 = vsel %vm338, %v704, %v697
    %v707 = vunpack.c.l.s4 1934713408
    %v708 = vunpack.c.0.s8 %v707
    %v709 = vperm.slane %v705, %v708
    %v710 = vsel %vm338, %v577, %v570
    %v712 = vunpack.c.l.s4 1983009808
    %v713 = vunpack.c.0.s8 %v712
    %v714 = vperm.slane %v710, %v713
    %v715 = vrot.slane %v578, 4
    %v716 = vsel %vm338, %v715, %v576
    %v718 = vunpack.c.l.s4 1983009808
    %v719 = vunpack.c.0.s8 %v718
    %v720 = vperm.slane %v716, %v719
    %v721 = vrot.slane %v720, 4
    %v722 = vsel %vm338, %v721, %v714
    %v724 = vunpack.c.l.s4 1934713408
    %v725 = vunpack.c.0.s8 %v724
    %v726 = vperm.slane %v722, %v725
    %v727 = vsel %vm338, %v596, %v589
    %v729 = vunpack.c.l.s4 1983009808
    %v730 = vunpack.c.0.s8 %v729
    %v731 = vperm.slane %v727, %v730
    %v732 = vrot.slane %v597, 4
    %v733 = vsel %vm338, %v732, %v595
    %v735 = vunpack.c.l.s4 1983009808
    %v736 = vunpack.c.0.s8 %v735
    %v737 = vperm.slane %v733, %v736
    %v738 = vrot.slane %v737, 4
    %v739 = vsel %vm338, %v738, %v731
    %v741 = vunpack.c.l.s4 1934713408
    %v742 = vunpack.c.0.s8 %v741
    %v743 = vperm.slane %v739, %v742
    %v744 = vsel %vm338, %v615, %v608
    %v746 = vunpack.c.l.s4 1983009808
    %v747 = vunpack.c.0.s8 %v746
    %v748 = vperm.slane %v744, %v747
    %v749 = vrot.slane %v616, 4
    %v750 = vsel %vm338, %v749, %v614
    %v752 = vunpack.c.l.s4 1983009808
    %v753 = vunpack.c.0.s8 %v752
    %v754 = vperm.slane %v750, %v753
    %v755 = vrot.slane %v754, 4
    %v756 = vsel %vm338, %v755, %v748
    %v758 = vunpack.c.l.s4 1934713408
    %v759 = vunpack.c.0.s8 %v758
    %v760 = vperm.slane %v756, %v759
    %v761 = vsel %vm338, %v634, %v627
    %v763 = vunpack.c.l.s4 1983009808
    %v764 = vunpack.c.0.s8 %v763
    %v765 = vperm.slane %v761, %v764
    %v766 = vrot.slane %v635, 4
    %v767 = vsel %vm338, %v766, %v633
    %v769 = vunpack.c.l.s4 1983009808
    %v770 = vunpack.c.0.s8 %v769
    %v771 = vperm.slane %v767, %v770
    %v772 = vrot.slane %v771, 4
    %v773 = vsel %vm338, %v772, %v765
    %v775 = vunpack.c.l.s4 1934713408
    %v776 = vunpack.c.0.s8 %v775
    %v777 = vperm.slane %v773, %v776
    %v778 = vsel %vm338, %v653, %v646
    %v780 = vunpack.c.l.s4 1983009808
    %v781 = vunpack.c.0.s8 %v780
    %v782 = vperm.slane %v778, %v781
    %v783 = vrot.slane %v654, 4
    %v784 = vsel %vm338, %v783, %v652
    %v786 = vunpack.c.l.s4 1983009808
    %v787 = vunpack.c.0.s8 %v786
    %v788 = vperm.slane %v784, %v787
    %v789 = vrot.slane %v788, 4
    %v790 = vsel %vm338, %v789, %v782
    %v792 = vunpack.c.l.s4 1934713408
    %v793 = vunpack.c.0.s8 %v792
    %v794 = vperm.slane %v790, %v793
    %v795 = vsel %vm338, %v672, %v665
    %v797 = vunpack.c.l.s4 1983009808
    %v798 = vunpack.c.0.s8 %v797
    %v799 = vperm.slane %v795, %v798
    %v800 = vrot.slane %v673, 4
    %v801 = vsel %vm338, %v800, %v671
    %v803 = vunpack.c.l.s4 1983009808
    %v804 = vunpack.c.0.s8 %v803
    %v805 = vperm.slane %v801, %v804
    %v806 = vrot.slane %v805, 4
    %v807 = vsel %vm338, %v806, %v799
    %v809 = vunpack.c.l.s4 1934713408
    %v810 = vunpack.c.0.s8 %v809
    %v811 = vperm.slane %v807, %v810
    %v812 = vsel %vm338, %v691, %v684
    %v814 = vunpack.c.l.s4 1983009808
    %v815 = vunpack.c.0.s8 %v814
    %v816 = vperm.slane %v812, %v815
    %v817 = vrot.slane %v692, 4
    %v818 = vsel %vm338, %v817, %v690
    %v820 = vunpack.c.l.s4 1983009808
    %v821 = vunpack.c.0.s8 %v820
    %v822 = vperm.slane %v818, %v821
    %v823 = vrot.slane %v822, 4
    %v824 = vsel %vm338, %v823, %v816
    %v826 = vunpack.c.l.s4 1934713408
    %v827 = vunpack.c.0.s8 %v826
    %v828 = vperm.slane %v824, %v827
    %v831 = vpack.i.b16 %v726, %v709
    %v832 = vshrl.u32 %v709, 16
    %v833 = vshrl.u32 %v726, 16
    %v834 = vpack.i.b16 %v833, %v832
    %v837 = vpack.i.b16 %v760, %v743
    %v838 = vshrl.u32 %v743, 16
    %v839 = vshrl.u32 %v760, 16
    %v840 = vpack.i.b16 %v839, %v838
    %v843 = vpack.i.b16 %v794, %v777
    %v844 = vshrl.u32 %v777, 16
    %v845 = vshrl.u32 %v794, 16
    %v846 = vpack.i.b16 %v845, %v844
    %v849 = vpack.i.b16 %v828, %v811
    %v850 = vshrl.u32 %v811, 16
    %v851 = vshrl.u32 %v828, 16
    %v852 = vpack.i.b16 %v851, %v850
    %853 = vrot.lane.b32.xlu0 %v310, 64
    %v854 = vpop.permute.xlu0 %853
    %855 = vrot.lane.b32.xlu0 %v311, 64
    %v856 = vpop.permute.xlu0 %855
    %857 = vrot.lane.b32.xlu0 %v312, 64
    %v858 = vpop.permute.xlu0 %857
    %859 = vrot.lane.b32.xlu0 %v313, 64
    %v860 = vpop.permute.xlu0 %859
    %861 = vrot.lane.b32.xlu0 %v494, 64
    %v862 = vpop.permute.xlu0 %861
    %863 = vrot.lane.b32.xlu0 %v496, 64
    %v864 = vpop.permute.xlu0 %863
    %865 = vrot.lane.b32.xlu0 %v498, 64
    %v866 = vpop.permute.xlu0 %865
    %867 = vrot.lane.b32.xlu0 %v500, 64
    %v868 = vpop.permute.xlu0 %867
    %v871 = vpack.i.b16 %v862, %v854
    %v872 = vshrl.u32 %v854, 16
    %v873 = vshrl.u32 %v862, 16
    %v874 = vpack.i.b16 %v873, %v872
    %v877 = vpack.i.b16 %v864, %v856
    %v878 = vshrl.u32 %v856, 16
    %v879 = vshrl.u32 %v864, 16
    %v880 = vpack.i.b16 %v879, %v878
    %v883 = vpack.i.b16 %v866, %v858
    %v884 = vshrl.u32 %v858, 16
    %v885 = vshrl.u32 %v866, 16
    %v886 = vpack.i.b16 %v885, %v884
    %v889 = vpack.i.b16 %v868, %v860
    %v890 = vshrl.u32 %v860, 16
    %v891 = vshrl.u32 %v868, 16
    %v892 = vpack.i.b16 %v891, %v890
    %v895 = vunpack.c.l.s4 1983009808
    %v896 = vunpack.c.0.s8 %v895
    %v897 = vperm.slane %v871, %v896
    %v898 = vrot.slane %v897, 4
    %v899 = vsel %vm338, 0, %v898
    %v901 = vunpack.c.l.s4 1934713408
    %v902 = vunpack.c.0.s8 %v901
    %v903 = vperm.slane %v897, %v902
    %v905 = vunpack.c.l.s4 1934713408
    %v906 = vunpack.c.0.s8 %v905
    %v907 = vperm.slane %v899, %v906
    %v908 = vrot.slane %v903, 4
    %v909 = vsel %vm338, 0, %v908
    %v910 = vrot.slane %v907, 4
    %v911 = vsel %vm338, 0, %v910
    %v914 = vunpack.c.l.s4 1983009808
    %v915 = vunpack.c.0.s8 %v914
    %v916 = vperm.slane %v874, %v915
    %v917 = vrot.slane %v916, 4
    %v918 = vsel %vm338, 0, %v917
    %v920 = vunpack.c.l.s4 1934713408
    %v921 = vunpack.c.0.s8 %v920
    %v922 = vperm.slane %v916, %v921
    %v924 = vunpack.c.l.s4 1934713408
    %v925 = vunpack.c.0.s8 %v924
    %v926 = vperm.slane %v918, %v925
    %v927 = vrot.slane %v922, 4
    %v928 = vsel %vm338, 0, %v927
    %v929 = vrot.slane %v926, 4
    %v930 = vsel %vm338, 0, %v929
    %v933 = vunpack.c.l.s4 1983009808
    %v934 = vunpack.c.0.s8 %v933
    %v935 = vperm.slane %v877, %v934
    %v936 = vrot.slane %v935, 4
    %v937 = vsel %vm338, 0, %v936
    %v939 = vunpack.c.l.s4 1934713408
    %v940 = vunpack.c.0.s8 %v939
    %v941 = vperm.slane %v935, %v940
    %v943 = vunpack.c.l.s4 1934713408
    %v944 = vunpack.c.0.s8 %v943
    %v945 = vperm.slane %v937, %v944
    %v946 = vrot.slane %v941, 4
    %v947 = vsel %vm338, 0, %v946
    %v948 = vrot.slane %v945, 4
    %v949 = vsel %vm338, 0, %v948
    %v952 = vunpack.c.l.s4 1983009808
    %v953 = vunpack.c.0.s8 %v952
    %v954 = vperm.slane %v880, %v953
    %v955 = vrot.slane %v954, 4
    %v956 = vsel %vm338, 0, %v955
    %v958 = vunpack.c.l.s4 1934713408
    %v959 = vunpack.c.0.s8 %v958
    %v960 = vperm.slane %v954, %v959
    %v962 = vunpack.c.l.s4 1934713408
    %v963 = vunpack.c.0.s8 %v962
    %v964 = vperm.slane %v956, %v963
    %v965 = vrot.slane %v960, 4
    %v966 = vsel %vm338, 0, %v965
    %v967 = vrot.slane %v964, 4
    %v968 = vsel %vm338, 0, %v967
    %v971 = vunpack.c.l.s4 1983009808
    %v972 = vunpack.c.0.s8 %v971
    %v973 = vperm.slane %v883, %v972
    %v974 = vrot.slane %v973, 4
    %v975 = vsel %vm338, 0, %v974
    %v977 = vunpack.c.l.s4 1934713408
    %v978 = vunpack.c.0.s8 %v977
    %v979 = vperm.slane %v973, %v978
    %v981 = vunpack.c.l.s4 1934713408
    %v982 = vunpack.c.0.s8 %v981
    %v983 = vperm.slane %v975, %v982
    %v984 = vrot.slane %v979, 4
    %v985 = vsel %vm338, 0, %v984
    %v986 = vrot.slane %v983, 4
    %v987 = vsel %vm338, 0, %v986
    %v990 = vunpack.c.l.s4 1983009808
    %v991 = vunpack.c.0.s8 %v990
    %v992 = vperm.slane %v886, %v991
    %v993 = vrot.slane %v992, 4
    %v994 = vsel %vm338, 0, %v993
    %v996 = vunpack.c.l.s4 1934713408
    %v997 = vunpack.c.0.s8 %v996
    %v998 = vperm.slane %v992, %v997
    %v1000 = vunpack.c.l.s4 1934713408
    %v1001 = vunpack.c.0.s8 %v1000
    %v1002 = vperm.slane %v994, %v1001
    %v1003 = vrot.slane %v998, 4
    %v1004 = vsel %vm338, 0, %v1003
    %v1005 = vrot.slane %v1002, 4
    %v1006 = vsel %vm338, 0, %v1005
    %v1009 = vunpack.c.l.s4 1983009808
    %v1010 = vunpack.c.0.s8 %v1009
    %v1011 = vperm.slane %v889, %v1010
    %v1012 = vrot.slane %v1011, 4
    %v1013 = vsel %vm338, 0, %v1012
    %v1015 = vunpack.c.l.s4 1934713408
    %v1016 = vunpack.c.0.s8 %v1015
    %v1017 = vperm.slane %v1011, %v1016
    %v1019 = vunpack.c.l.s4 1934713408
    %v1020 = vunpack.c.0.s8 %v1019
    %v1021 = vperm.slane %v1013, %v1020
    %v1022 = vrot.slane %v1017, 4
    %v1023 = vsel %vm338, 0, %v1022
    %v1024 = vrot.slane %v1021, 4
    %v1025 = vsel %vm338, 0, %v1024
    %v1028 = vunpack.c.l.s4 1983009808
    %v1029 = vunpack.c.0.s8 %v1028
    %v1030 = vperm.slane %v892, %v1029
    %v1031 = vrot.slane %v1030, 4
    %v1032 = vsel %vm338, 0, %v1031
    %v1034 = vunpack.c.l.s4 1934713408
    %v1035 = vunpack.c.0.s8 %v1034
    %v1036 = vperm.slane %v1030, %v1035
    %v1038 = vunpack.c.l.s4 1934713408
    %v1039 = vunpack.c.0.s8 %v1038
    %v1040 = vperm.slane %v1032, %v1039
    %v1041 = vrot.slane %v1036, 4
    %v1042 = vsel %vm338, 0, %v1041
    %v1043 = vrot.slane %v1040, 4
    %v1044 = vsel %vm338, 0, %v1043
    %v1045 = vsel %vm338, %v910, %v903
    %v1047 = vunpack.c.l.s4 1983009808
    %v1048 = vunpack.c.0.s8 %v1047
    %v1049 = vperm.slane %v1045, %v1048
    %v1050 = vrot.slane %v911, 4
    %v1051 = vsel %vm338, %v1050, %v909
    %v1053 = vunpack.c.l.s4 1983009808
    %v1054 = vunpack.c.0.s8 %v1053
    %v1055 = vperm.slane %v1051, %v1054
    %v1056 = vrot.slane %v1055, 4
    %v1057 = vsel %vm338, %v1056, %v1049
    %v1059 = vunpack.c.l.s4 1934713408
    %v1060 = vunpack.c.0.s8 %v1059
    %v1061 = vperm.slane %v1057, %v1060
    %v1062 = vsel %vm338, %v929, %v922
    %v1064 = vunpack.c.l.s4 1983009808
    %v1065 = vunpack.c.0.s8 %v1064
    %v1066 = vperm.slane %v1062, %v1065
    %v1067 = vrot.slane %v930, 4
    %v1068 = vsel %vm338, %v1067, %v928
    %v1070 = vunpack.c.l.s4 1983009808
    %v1071 = vunpack.c.0.s8 %v1070
    %v1072 = vperm.slane %v1068, %v1071
    %v1073 = vrot.slane %v1072, 4
    %v1074 = vsel %vm338, %v1073, %v1066
    %v1076 = vunpack.c.l.s4 1934713408
    %v1077 = vunpack.c.0.s8 %v1076
    %v1078 = vperm.slane %v1074, %v1077
    %v1079 = vsel %vm338, %v948, %v941
    %v1081 = vunpack.c.l.s4 1983009808
    %v1082 = vunpack.c.0.s8 %v1081
    %v1083 = vperm.slane %v1079, %v1082
    %v1084 = vrot.slane %v949, 4
    %v1085 = vsel %vm338, %v1084, %v947
    %v1087 = vunpack.c.l.s4 1983009808
    %v1088 = vunpack.c.0.s8 %v1087
    %v1089 = vperm.slane %v1085, %v1088
    %v1090 = vrot.slane %v1089, 4
    %v1091 = vsel %vm338, %v1090, %v1083
    %v1093 = vunpack.c.l.s4 1934713408
    %v1094 = vunpack.c.0.s8 %v1093
    %v1095 = vperm.slane %v1091, %v1094
    %v1096 = vsel %vm338, %v967, %v960
    %v1098 = vunpack.c.l.s4 1983009808
    %v1099 = vunpack.c.0.s8 %v1098
    %v1100 = vperm.slane %v1096, %v1099
    %v1101 = vrot.slane %v968, 4
    %v1102 = vsel %vm338, %v1101, %v966
    %v1104 = vunpack.c.l.s4 1983009808
    %v1105 = vunpack.c.0.s8 %v1104
    %v1106 = vperm.slane %v1102, %v1105
    %v1107 = vrot.slane %v1106, 4
    %v1108 = vsel %vm338, %v1107, %v1100
    %v1110 = vunpack.c.l.s4 1934713408
    %v1111 = vunpack.c.0.s8 %v1110
    %v1112 = vperm.slane %v1108, %v1111
    %v1113 = vsel %vm338, %v986, %v979
    %v1115 = vunpack.c.l.s4 1983009808
    %v1116 = vunpack.c.0.s8 %v1115
    %v1117 = vperm.slane %v1113, %v1116
    %v1118 = vrot.slane %v987, 4
    %v1119 = vsel %vm338, %v1118, %v985
    %v1121 = vunpack.c.l.s4 1983009808
    %v1122 = vunpack.c.0.s8 %v1121
    %v1123 = vperm.slane %v1119, %v1122
    %v1124 = vrot.slane %v1123, 4
    %v1125 = vsel %vm338, %v1124, %v1117
    %v1127 = vunpack.c.l.s4 1934713408
    %v1128 = vunpack.c.0.s8 %v1127
    %v1129 = vperm.slane %v1125, %v1128
    %v1130 = vsel %vm338, %v1005, %v998
    %v1132 = vunpack.c.l.s4 1983009808
    %v1133 = vunpack.c.0.s8 %v1132
    %v1134 = vperm.slane %v1130, %v1133
    %v1135 = vrot.slane %v1006, 4
    %v1136 = vsel %vm338, %v1135, %v1004
    %v1138 = vunpack.c.l.s4 1983009808
    %v1139 = vunpack.c.0.s8 %v1138
    %v1140 = vperm.slane %v1136, %v1139
    %v1141 = vrot.slane %v1140, 4
    %v1142 = vsel %vm338, %v1141, %v1134
    %v1144 = vunpack.c.l.s4 1934713408
    %v1145 = vunpack.c.0.s8 %v1144
    %v1146 = vperm.slane %v1142, %v1145
    %v1147 = vsel %vm338, %v1024, %v1017
    %v1149 = vunpack.c.l.s4 1983009808
    %v1150 = vunpack.c.0.s8 %v1149
    %v1151 = vperm.slane %v1147, %v1150
    %v1152 = vrot.slane %v1025, 4
    %v1153 = vsel %vm338, %v1152, %v1023
    %v1155 = vunpack.c.l.s4 1983009808
    %v1156 = vunpack.c.0.s8 %v1155
    %v1157 = vperm.slane %v1153, %v1156
    %v1158 = vrot.slane %v1157, 4
    %v1159 = vsel %vm338, %v1158, %v1151
    %v1161 = vunpack.c.l.s4 1934713408
    %v1162 = vunpack.c.0.s8 %v1161
    %v1163 = vperm.slane %v1159, %v1162
    %v1164 = vsel %vm338, %v1043, %v1036
    %v1166 = vunpack.c.l.s4 1983009808
    %v1167 = vunpack.c.0.s8 %v1166
    %v1168 = vperm.slane %v1164, %v1167
    %v1169 = vrot.slane %v1044, 4
    %v1170 = vsel %vm338, %v1169, %v1042
    %v1172 = vunpack.c.l.s4 1983009808
    %v1173 = vunpack.c.0.s8 %v1172
    %v1174 = vperm.slane %v1170, %v1173
    %v1175 = vrot.slane %v1174, 4
    %v1176 = vsel %vm338, %v1175, %v1168
    %v1178 = vunpack.c.l.s4 1934713408
    %v1179 = vunpack.c.0.s8 %v1178
    %v1180 = vperm.slane %v1176, %v1179
    %v1183 = vpack.i.b16 %v1078, %v1061
    %v1184 = vshrl.u32 %v1061, 16
    %v1185 = vshrl.u32 %v1078, 16
    %v1186 = vpack.i.b16 %v1185, %v1184
    %v1189 = vpack.i.b16 %v1112, %v1095
    %v1190 = vshrl.u32 %v1095, 16
    %v1191 = vshrl.u32 %v1112, 16
    %v1192 = vpack.i.b16 %v1191, %v1190
    %v1195 = vpack.i.b16 %v1146, %v1129
    %v1196 = vshrl.u32 %v1129, 16
    %v1197 = vshrl.u32 %v1146, 16
    %v1198 = vpack.i.b16 %v1197, %v1196
    %v1201 = vpack.i.b16 %v1180, %v1163
    %v1202 = vshrl.u32 %v1163, 16
    %v1203 = vshrl.u32 %v1180, 16
    %v1204 = vpack.i.b16 %v1203, %v1202
    %v1205 = vunpack.c.l.b16 %v831
    %v1206 = vunpack.c.l.b16 %v837
    %v1207 = vpack.c.b16 %v1206, %v1205
    %vm1208 = vcmask 130048
    %v1210 = vsel %vm1208, %v479, 0
    %v1213 = vsel %vm1208, %v1207, 0
    %1215 = vmatpush.bf16.xpose.msra.mxu0 0
    %1216 = vmatpush.bf16.xpose.msra.mxu0 0
    %1217 = vmatpush.bf16.xpose.msra.mxu0 0
    %1218 = vmatpush.bf16.xpose.msra.mxu0 0
    %1219 = vmatpush.bf16.xpose.msra.mxu0 0
    %1220 = vmatpush.bf16.xpose.msra.mxu0 0
    %1221 = vmatpush.bf16.xpose.msra.mxu0 0
    %1222 = vmatpush.bf16.xpose.msra.mxu0 %v1213
    %1223 = vmatmul.bf16.gmra.mxu0 %v1210
    %v1224 = vpop.f32.mrf.mxu0
    %v1225 = vadd.f32 0.0, %v1224
    %v1226 = vpop.f32.mrf.mxu0
    %1227 = vdwg.mxu0
    %v1228 = vunpack.c.l.b16 %v834
    %v1229 = vunpack.c.l.b16 %v840
    %v1230 = vpack.c.b16 %v1229, %v1228
    %v1232 = vsel %vm1208, %v482, 0
    %v1235 = vsel %vm1208, %v1230, 0
    %1237 = vmatpush.bf16.xpose.msra.mxu0 0
    %1238 = vmatpush.bf16.xpose.msra.mxu0 0
    %1239 = vmatpush.bf16.xpose.msra.mxu0 0
    %1240 = vmatpush.bf16.xpose.msra.mxu0 0
    %1241 = vmatpush.bf16.xpose.msra.mxu0 0
    %1242 = vmatpush.bf16.xpose.msra.mxu0 0
    %1243 = vmatpush.bf16.xpose.msra.mxu0 0
    %1244 = vmatpush.bf16.xpose.msra.mxu0 %v1235
    %1245 = vmatmul.bf16.gmra.mxu0 %v1232
    %v1246 = vpop.f32.mrf.mxu0
    %v1247 = vadd.f32 0.0, %v1246
    %v1248 = vpop.f32.mrf.mxu0
    %1249 = vdwg.mxu0
    %v1250 = vunpack.c.l.b16 %v843
    %v1251 = vunpack.c.l.b16 %v849
    %v1252 = vpack.c.b16 %v1251, %v1250
    %v1254 = vsel %vm1208, %v485, 0
    %v1257 = vsel %vm1208, %v1252, 0
    %1259 = vmatpush.bf16.xpose.msra.mxu0 0
    %1260 = vmatpush.bf16.xpose.msra.mxu0 0
    %1261 = vmatpush.bf16.xpose.msra.mxu0 0
    %1262 = vmatpush.bf16.xpose.msra.mxu0 0
    %1263 = vmatpush.bf16.xpose.msra.mxu0 0
    %1264 = vmatpush.bf16.xpose.msra.mxu0 0
    %1265 = vmatpush.bf16.xpose.msra.mxu0 0
    %1266 = vmatpush.bf16.xpose.msra.mxu0 %v1257
    %1267 = vmatmul.bf16.gmra.mxu0 %v1254
    %v1268 = vpop.f32.mrf.mxu0
    %v1269 = vadd.f32 0.0, %v1268
    %v1270 = vpop.f32.mrf.mxu0
    %1271 = vdwg.mxu0
    %v1272 = vunpack.c.l.b16 %v846
    %v1273 = vunpack.c.l.b16 %v852
    %v1274 = vpack.c.b16 %v1273, %v1272
    %v1276 = vsel %vm1208, %v488, 0
    %v1279 = vsel %vm1208, %v1274, 0
    %1281 = vmatpush.bf16.xpose.msra.mxu0 0
    %1282 = vmatpush.bf16.xpose.msra.mxu0 0
    %1283 = vmatpush.bf16.xpose.msra.mxu0 0
    %1284 = vmatpush.bf16.xpose.msra.mxu0 0
    %1285 = vmatpush.bf16.xpose.msra.mxu0 0
    %1286 = vmatpush.bf16.xpose.msra.mxu0 0
    %1287 = vmatpush.bf16.xpose.msra.mxu0 0
    %1288 = vmatpush.bf16.xpose.msra.mxu0 %v1279
    %1289 = vmatmul.bf16.gmra.mxu0 %v1276
    %v1290 = vpop.f32.mrf.mxu0
    %v1291 = vadd.f32 0.0, %v1290
    %v1292 = vpop.f32.mrf.mxu0
    %1293 = vdwg.mxu0
    %v1294 = vsel %vm1208, %v1225, -inf
    %1295 = vmax.xlane.f32.xlu0 %v1294
    %v1296 = vpop.xlane.xlu0 %1295
    %v1297 = vsel %vm1208, %v1247, -inf
    %1298 = vmax.xlane.f32.xlu0 %v1297
    %v1299 = vpop.xlane.xlu0 %1298
    %v1300 = vsel %vm1208, %v1269, -inf
    %1301 = vmax.xlane.f32.xlu0 %v1300
    %v1302 = vpop.xlane.xlu0 %1301
    %v1303 = vsel %vm1208, %v1291, -inf
    %1304 = vmax.xlane.f32.xlu0 %v1303
    %v1305 = vpop.xlane.xlu0 %1304
    %v1306 = vsub.f32 %v1225, %v1296
    %v1307 = vsub.f32 %v1247, %v1299
    %v1308 = vsub.f32 %v1269, %v1302
    %v1309 = vsub.f32 %v1291, %v1305
    %v1310 = vmul.f32 %v1306, 1.442695
    %v1311 = vpow.pop %v1310
    %v1312 = vmul.f32 %v1307, 1.442695
    %v1313 = vpow.pop %v1312
    %v1314 = vmul.f32 %v1308, 1.442695
    %v1315 = vpow.pop %v1314
    %v1316 = vmul.f32 %v1309, 1.442695
    %v1317 = vpow.pop %v1316
    %v1318 = vsel %vm1208, %v1311, 0.0
    %1319 = vadd.xlane.f32.xlu0 %v1318
    %v1320 = vpop.xlane.xlu0 %1319
    %v1321 = vsel %vm1208, %v1313, 0.0
    %1322 = vadd.xlane.f32.xlu0 %v1321
    %v1323 = vpop.xlane.xlu0 %1322
    %v1324 = vsel %vm1208, %v1315, 0.0
    %1325 = vadd.xlane.f32.xlu0 %v1324
    %v1326 = vpop.xlane.xlu0 %1325
    %v1327 = vsel %vm1208, %v1317, 0.0
    %1328 = vadd.xlane.f32.xlu0 %v1327
    %v1329 = vpop.xlane.xlu0 %1328
    %v1330 = vrcp.pop %v1320
    %v1331 = vrcp.pop %v1323
    %v1332 = vrcp.pop %v1326
    %v1333 = vrcp.pop %v1329
    %v1334 = vmul.f32 %v1311, %v1330
    %v1335 = vmul.f32 %v1313, %v1331
    %v1336 = vmul.f32 %v1315, %v1332
    %v1337 = vmul.f32 %v1317, %v1333
    %v1338 = vpack.c.bf16 %v1334, %v1334
    %v1339 = vpack.c.bf16 %v1335, %v1335
    %v1340 = vpack.c.bf16 %v1336, %v1336
    %v1341 = vpack.c.bf16 %v1337, %v1337
    %v1342 = vunpack.c.l.b16 %v1183
    %v1343 = vunpack.c.l.b16 %v1189
    %v1344 = vpack.c.b16 %v1343, %v1342
    %v1347 = vsel %vm1208, %v1338, 0
    %1349 = vmatpush.bf16.msra.mxu0 0
    %1350 = vmatpush.bf16.msra.mxu0 0
    %1351 = vmatpush.bf16.msra.mxu0 0
    %1352 = vmatpush.bf16.msra.mxu0 0
    %1353 = vmatpush.bf16.msra.mxu0 0
    %1354 = vmatpush.bf16.msra.mxu0 0
    %1355 = vmatpush.bf16.msra.mxu0 0
    %1356 = vmatpush.bf16.msra.mxu0 %v1344
    %1357 = vmatmul.bf16.gmra.mxu0 %v1347
    %v1358 = vpop.f32.mrf.mxu0
    %v1359 = vadd.f32 0.0, %v1358
    %v1360 = vpop.f32.mrf.mxu0
    %1361 = vdwg.mxu0
    %v1362 = vunpack.c.l.b16 %v1186
    %v1363 = vunpack.c.l.b16 %v1192
    %v1364 = vpack.c.b16 %v1363, %v1362
    %v1367 = vsel %vm1208, %v1339, 0
    %1369 = vmatpush.bf16.msra.mxu0 0
    %1370 = vmatpush.bf16.msra.mxu0 0
    %1371 = vmatpush.bf16.msra.mxu0 0
    %1372 = vmatpush.bf16.msra.mxu0 0
    %1373 = vmatpush.bf16.msra.mxu0 0
    %1374 = vmatpush.bf16.msra.mxu0 0
    %1375 = vmatpush.bf16.msra.mxu0 0
    %1376 = vmatpush.bf16.msra.mxu0 %v1364
    %1377 = vmatmul.bf16.gmra.mxu0 %v1367
    %v1378 = vpop.f32.mrf.mxu0
    %v1379 = vadd.f32 0.0, %v1378
    %v1380 = vpop.f32.mrf.mxu0
    %1381 = vdwg.mxu0
    %v1382 = vunpack.c.l.b16 %v1195
    %v1383 = vunpack.c.l.b16 %v1201
    %v1384 = vpack.c.b16 %v1383, %v1382
    %v1387 = vsel %vm1208, %v1340, 0
    %1389 = vmatpush.bf16.msra.mxu0 0
    %1390 = vmatpush.bf16.msra.mxu0 0
    %1391 = vmatpush.bf16.msra.mxu0 0
    %1392 = vmatpush.bf16.msra.mxu0 0
    %1393 = vmatpush.bf16.msra.mxu0 0
    %1394 = vmatpush.bf16.msra.mxu0 0
    %1395 = vmatpush.bf16.msra.mxu0 0
    %1396 = vmatpush.bf16.msra.mxu0 %v1384
    %1397 = vmatmul.bf16.gmra.mxu0 %v1387
    %v1398 = vpop.f32.mrf.mxu0
    %v1399 = vadd.f32 0.0, %v1398
    %v1400 = vpop.f32.mrf.mxu0
    %1401 = vdwg.mxu0
    %v1402 = vunpack.c.l.b16 %v1198
    %v1403 = vunpack.c.l.b16 %v1204
    %v1404 = vpack.c.b16 %v1403, %v1402
    %v1407 = vsel %vm1208, %v1341, 0
    %1409 = vmatpush.bf16.msra.mxu0 0
    %1410 = vmatpush.bf16.msra.mxu0 0
    %1411 = vmatpush.bf16.msra.mxu0 0
    %1412 = vmatpush.bf16.msra.mxu0 0
    %1413 = vmatpush.bf16.msra.mxu0 0
    %1414 = vmatpush.bf16.msra.mxu0 0
    %1415 = vmatpush.bf16.msra.mxu0 0
    %1416 = vmatpush.bf16.msra.mxu0 %v1404
    %1417 = vmatmul.bf16.gmra.mxu0 %v1407
    %v1418 = vpop.f32.mrf.mxu0
    %v1419 = vadd.f32 0.0, %v1418
    %v1420 = vpop.f32.mrf.mxu0
    %1421 = vdwg.mxu0
    %v1422 = vrot.slane %v1359, 4
    %vm1423 = vcmask 1047556
    %v1424 = vsel %vm1423, 0.0, %v1422
    %v1426 = vunpack.c.l.s4 1983009808
    %v1427 = vunpack.c.0.s8 %v1426
    %v1428 = vperm.slane %v1359, %v1427
    %v1430 = vunpack.c.l.s4 1983009808
    %v1431 = vunpack.c.0.s8 %v1430
    %v1432 = vperm.slane %v1424, %v1431
    %v1433 = vrot.slane %v1379, 4
    %v1434 = vsel %vm1423, 0.0, %v1433
    %v1436 = vunpack.c.l.s4 1983009808
    %v1437 = vunpack.c.0.s8 %v1436
    %v1438 = vperm.slane %v1379, %v1437
    %v1440 = vunpack.c.l.s4 1983009808
    %v1441 = vunpack.c.0.s8 %v1440
    %v1442 = vperm.slane %v1434, %v1441
    %v1443 = vrot.slane %v1438, 4
    %v1444 = vsel %vm1423, %v1443, %v1428
    %v1445 = vrot.slane %v1428, 4
    %v1446 = vsel %vm1423, %v1438, %v1445
    %v1448 = vunpack.c.l.s4 1934713408
    %v1449 = vunpack.c.0.s8 %v1448
    %v1450 = vperm.slane %v1444, %v1449
    %v1452 = vunpack.c.l.s4 1934713408
    %v1453 = vunpack.c.0.s8 %v1452
    %v1454 = vperm.slane %v1446, %v1453
    %v1455 = vrot.slane %v1442, 4
    %v1456 = vsel %vm1423, %v1455, %v1432
    %v1457 = vrot.slane %v1432, 4
    %v1458 = vsel %vm1423, %v1442, %v1457
    %v1460 = vunpack.c.l.s4 1934713408
    %v1461 = vunpack.c.0.s8 %v1460
    %v1462 = vperm.slane %v1456, %v1461
    %v1464 = vunpack.c.l.s4 1934713408
    %v1465 = vunpack.c.0.s8 %v1464
    %v1466 = vperm.slane %v1458, %v1465
    %v1467 = vrot.slane %v1450, 4
    %v1468 = vsel %vm1423, 0.0, %v1467
    %v1469 = vrot.slane %v1454, 4
    %v1470 = vsel %vm1423, 0.0, %v1469
    %v1471 = vrot.slane %v1462, 4
    %v1472 = vsel %vm1423, 0.0, %v1471
    %v1473 = vrot.slane %v1466, 4
    %v1474 = vsel %vm1423, 0.0, %v1473
    %v1475 = vrot.slane %v1399, 4
    %v1476 = vsel %vm1423, 0.0, %v1475
    %v1478 = vunpack.c.l.s4 1983009808
    %v1479 = vunpack.c.0.s8 %v1478
    %v1480 = vperm.slane %v1399, %v1479
    %v1482 = vunpack.c.l.s4 1983009808
    %v1483 = vunpack.c.0.s8 %v1482
    %v1484 = vperm.slane %v1476, %v1483
    %v1485 = vrot.slane %v1419, 4
    %v1486 = vsel %vm1423, 0.0, %v1485
    %v1488 = vunpack.c.l.s4 1983009808
    %v1489 = vunpack.c.0.s8 %v1488
    %v1490 = vperm.slane %v1419, %v1489
    %v1492 = vunpack.c.l.s4 1983009808
    %v1493 = vunpack.c.0.s8 %v1492
    %v1494 = vperm.slane %v1486, %v1493
    %v1495 = vrot.slane %v1490, 4
    %v1496 = vsel %vm1423, %v1495, %v1480
    %v1497 = vrot.slane %v1480, 4
    %v1498 = vsel %vm1423, %v1490, %v1497
    %v1500 = vunpack.c.l.s4 1934713408
    %v1501 = vunpack.c.0.s8 %v1500
    %v1502 = vperm.slane %v1496, %v1501
    %v1504 = vunpack.c.l.s4 1934713408
    %v1505 = vunpack.c.0.s8 %v1504
    %v1506 = vperm.slane %v1498, %v1505
    %v1507 = vrot.slane %v1494, 4
    %v1508 = vsel %vm1423, %v1507, %v1484
    %v1509 = vrot.slane %v1484, 4
    %v1510 = vsel %vm1423, %v1494, %v1509
    %v1512 = vunpack.c.l.s4 1934713408
    %v1513 = vunpack.c.0.s8 %v1512
    %v1514 = vperm.slane %v1508, %v1513
    %v1516 = vunpack.c.l.s4 1934713408
    %v1517 = vunpack.c.0.s8 %v1516
    %v1518 = vperm.slane %v1510, %v1517
    %v1519 = vrot.slane %v1502, 4
    %v1520 = vsel %vm1423, 0.0, %v1519
    %v1521 = vrot.slane %v1506, 4
    %v1522 = vsel %vm1423, 0.0, %v1521
    %v1523 = vrot.slane %v1514, 4
    %v1524 = vsel %vm1423, 0.0, %v1523
    %v1525 = vrot.slane %v1518, 4
    %v1526 = vsel %vm1423, 0.0, %v1525
    %v1527 = vsel %vm1423, %v1469, %v1450
    %v1529 = vunpack.c.l.s4 1983009808
    %v1530 = vunpack.c.0.s8 %v1529
    %v1531 = vperm.slane %v1527, %v1530
    %v1532 = vrot.slane %v1470, 4
    %v1533 = vsel %vm1423, %v1532, %v1468
    %v1535 = vunpack.c.l.s4 1983009808
    %v1536 = vunpack.c.0.s8 %v1535
    %v1537 = vperm.slane %v1533, %v1536
    %v1538 = vsel %vm1423, %v1473, %v1462
    %v1540 = vunpack.c.l.s4 1983009808
    %v1541 = vunpack.c.0.s8 %v1540
    %v1542 = vperm.slane %v1538, %v1541
    %v1543 = vrot.slane %v1474, 4
    %v1544 = vsel %vm1423, %v1543, %v1472
    %v1546 = vunpack.c.l.s4 1983009808
    %v1547 = vunpack.c.0.s8 %v1546
    %v1548 = vperm.slane %v1544, %v1547
    %v1549 = vrot.slane %v1537, 4
    %v1550 = vsel %vm1423, %v1549, %v1531
    %v1552 = vunpack.c.l.s4 1934713408
    %v1553 = vunpack.c.0.s8 %v1552
    %v1554 = vperm.slane %v1550, %v1553
    %v1555 = vrot.slane %v1548, 4
    %v1556 = vsel %vm1423, %v1555, %v1542
    %v1558 = vunpack.c.l.s4 1934713408
    %v1559 = vunpack.c.0.s8 %v1558
    %v1560 = vperm.slane %v1556, %v1559
    %v1561 = vrot.slane %v1560, 4
    %v1562 = vsel %vm1423, %v1561, %v1554
    %v1563 = vrot.slane %v1554, 4
    %v1564 = vsel %vm1423, %v1560, %v1563
    %v1565 = vsel %vm1423, %v1521, %v1502
    %v1567 = vunpack.c.l.s4 1983009808
    %v1568 = vunpack.c.0.s8 %v1567
    %v1569 = vperm.slane %v1565, %v1568
    %v1570 = vrot.slane %v1522, 4
    %v1571 = vsel %vm1423, %v1570, %v1520
    %v1573 = vunpack.c.l.s4 1983009808
    %v1574 = vunpack.c.0.s8 %v1573
    %v1575 = vperm.slane %v1571, %v1574
    %v1576 = vsel %vm1423, %v1525, %v1514
    %v1578 = vunpack.c.l.s4 1983009808
    %v1579 = vunpack.c.0.s8 %v1578
    %v1580 = vperm.slane %v1576, %v1579
    %v1581 = vrot.slane %v1526, 4
    %v1582 = vsel %vm1423, %v1581, %v1524
    %v1584 = vunpack.c.l.s4 1983009808
    %v1585 = vunpack.c.0.s8 %v1584
    %v1586 = vperm.slane %v1582, %v1585
    %v1587 = vrot.slane %v1575, 4
    %v1588 = vsel %vm1423, %v1587, %v1569
    %v1590 = vunpack.c.l.s4 1934713408
    %v1591 = vunpack.c.0.s8 %v1590
    %v1592 = vperm.slane %v1588, %v1591
    %v1593 = vrot.slane %v1586, 4
    %v1594 = vsel %vm1423, %v1593, %v1580
    %v1596 = vunpack.c.l.s4 1934713408
    %v1597 = vunpack.c.0.s8 %v1596
    %v1598 = vperm.slane %v1594, %v1597
    %v1599 = vrot.slane %v1598, 4
    %v1600 = vsel %vm1423, %v1599, %v1592
    %v1601 = vrot.slane %v1592, 4
    %v1602 = vsel %vm1423, %v1598, %v1601
    %1605 = vrot.lane.b32.xlu0 %v1564, 16
    %v1606 = vpop.permute.xlu0 %1605
    %1607 = vrot.lane.b32.xlu0 %v1602, 16
    %v1608 = vpop.permute.xlu0 %1607
    %v1611 = vsel %vm1208, %v1562, %v1606
    %v1612 = vsel %vm1208, %v1600, %v1608
    %1613 = vst.msk [vmem:[#allocation8] sm:$0xff] %vm80, %v1611
    %1614 = vst.msk [vmem:[#allocation8 + $0x8] sm:$0xff] %vm80, %v1612
    // Predicated region
    $region46: #{tpu_custom_call.1} parent=1 // pred_check
      _
    $region47: #{tpu_custom_call.1} parent=1 // pred_check_branch
      %1616 = sbr.rel (0) target = $region49
    $region48: #{tpu_custom_call.1} parent=1 // pred_region
      %1618 = vsyncadd [#allocation4], 0
      %s1619 = sshll.u32 [#allocation8], 4
      %s1620 = int_to_ptr.vmem [resolvable:$true] %s1619
      %s1621 = sshll.u32 %s8, 4
      %s1622 = int_to_ptr.hbm [resolvable:$true] %s1621
      %1627 = dma.vmem_to_hbm [thread:$0]  %s1620, 256, %s1622, [#allocation4], 128, 128, 8
    $region49: #{tpu_custom_call.1} parent=1 // pred_fallthru
      _
    // Predicated region
    $region50: #{tpu_custom_call.1} parent=1 // pred_check
      _
    $region51: #{tpu_custom_call.1} parent=1 // pred_check_branch
      %1629 = sbr.rel (0) target = $region53
    $region52: #{tpu_custom_call.1} parent=1 // pred_region
      %1631 = dma.done [#allocation4], 256
    $region53: #{tpu_custom_call.1} parent=1 // pred_fallthru
      _
    %1632 = vsyncpa [#allocation3], 1
    %1633 = vsyncpa [#allocation6], 1
    %1634 = vsyncpa [#allocation4], 1

</llo_original>
